<compile_context>
chip_gen: v5e
topology: v5e:2x2
jax: 0.10.0
libtpu: 0.0.40
codegen_flags: <defaults>
</compile_context>

<pallas_src>
import jax
import jax.numpy as jnp
import numpy as np
from jax.experimental import pallas as pl
from jax.experimental.pallas import tpu as pltpu

HIDDEN = 32        # hidden_size
OUTPUT = 64        # output_size (vocab)
MAX_LENGTH = 52    # attention span (as in the PyTorch module)
ENC_PAD = 128      # attention length padded to one 128-lane tile
W_SLAB = 768       # packed weight slab: [emb(256) | h(256) | x(128) | out(128)]
B_SLAB = 512       # packed bias slab:   [emb(256) | gates(128) | out(128)]
OUT_W = 384        # output slab width:  [logp(128) | attn_w(128) | hidden(128)]
NEG = -1e30        # softmax padding bias (exp underflows to exactly 0 in f32)


def attn_decoder_kernel(emb_ref,     # VMEM [T, H]       pre-gathered embeddings (dropout == identity)
                        h0_ref,      # VMEM [1, H]       initial hidden
                        encwc_ref,   # VMEM [ENC_PAD, H] encoder_outputs(padded) @ Wc[h-part]
                        w_ref,       # VMEM [H, 768]     packed weights
                        b_ref,       # VMEM [1, 512]     packed biases
                        out_ref,     # VMEM [T, 384]     packed per-step outputs
                        pre_ref,     # VMEM scratch [T, 256]  batched embedding partials
                        hbuf_ref):   # VMEM scratch [T, H]    per-step hidden states
    H = HIDDEN
    T = emb_ref.shape[0]

    # Loop-invariant sections, loaded once (hoisted above the recurrence).
    w_h = w_ref[:, 256:512]          # [H,256]: attn h-part(128) | Whh r|z|n (96) | pad(32)
    w_x = w_ref[:, 512:640]          # [H,128]: Wih r|z|n (96) | pad(32)
    b_g = b_ref[:, 256:384]          # [1,128]: b_r | b_z | b_in | b_hn
    encwc = encwc_ref[...]           # [ENC_PAD, H]

    # Batched (off-critical-path) precompute over ALL steps:
    #   cols   0:128  -> emb @ Wa[emb-part] + ba  (pad lanes already biased to -1e30)
    #   cols 128:160  -> emb @ Wc[emb-part] + bc
    pre_ref[...] = (jnp.dot(emb_ref[...], w_ref[:, 0:256],
                            preferred_element_type=jnp.float32)
                    + b_ref[:, 0:256])

    def step(t, h):
        row = pl.ds(t, 1)

        # h-dependent partials in ONE wide matmul: [attn_h(128) | gh_r | gh_z | gh_n | pad]
        hp = jnp.dot(h, w_h, preferred_element_type=jnp.float32)        # [1, 256]

        # attn_weights = softmax(cat(emb, h) @ Wa + ba); pad lanes -1e30 -> exp == 0
        a_logits = pre_ref[row, 0:128] + hp[:, 0:128]
        m = jnp.max(a_logits, axis=1, keepdims=True)
        e = jnp.exp(a_logits - m)
        attn_w = e * pl.reciprocal(jnp.sum(e, axis=1, keepdims=True), approx=True)
        out_ref[row, 128:256] = attn_w

        # x = relu(attn_combine(cat(emb, attn_applied)))
        # attn_applied @ Wc[h-part] is fused as attn_w @ (enc @ Wc[h-part]) (precomputed).
        x = jnp.maximum(
            pre_ref[row, 128:160]
            + jnp.dot(attn_w, encwc, preferred_element_type=jnp.float32), 0.0)   # [1, H]

        # fused single-step GRU (PyTorch GRUCell semantics)
        gi = jnp.dot(x, w_x, preferred_element_type=jnp.float32)        # [1,128] = gi_r|gi_z|gi_n|pad
        r = jax.nn.sigmoid(gi[:, 0:H] + hp[:, 128:160] + b_g[:, 0:H])
        z = jax.nn.sigmoid(gi[:, H:2 * H] + hp[:, 160:192] + b_g[:, H:2 * H])
        n = jnp.tanh(gi[:, 2 * H:3 * H] + b_g[:, 2 * H:3 * H]
                     + r * (hp[:, 192:224] + b_g[:, 3 * H:4 * H]))
        h_new = (1.0 - z) * n + z * h
        hbuf_ref[row, :] = h_new
        return h_new

    _ = jax.lax.fori_loop(0, T, step, h0_ref[...], unroll=True)

    # Batched output head (off the recurrent chain): one [T,H]@[H,128] matmul + one
    # [T,128] log-softmax for all steps; pad lanes biased to -1e30.
    h_all = hbuf_ref[...]                                               # [T, H]
    logits = (jnp.dot(h_all, w_ref[:, 640:768], preferred_element_type=jnp.float32)
              + b_ref[:, 384:512])                                      # [T, 128]
    m2 = jnp.max(logits, axis=1, keepdims=True)
    lse = m2 + jnp.log(jnp.sum(jnp.exp(logits - m2), axis=1, keepdims=True))
    out_ref[:, 0:128] = logits - lse
    out_ref[:, 256:384] = jnp.concatenate(
        [h_all, jnp.zeros((T, 128 - HIDDEN), jnp.float32)], axis=1)


def init_params(key):
    ks = jax.random.split(key, 11)
    s = 0.1
    return {
        "embedding": s * jax.random.normal(ks[0], (OUTPUT, HIDDEN), jnp.float32),
        "wa":  s * jax.random.normal(ks[1], (2 * HIDDEN, MAX_LENGTH), jnp.float32),
        "ba":  s * jax.random.normal(ks[2], (1, MAX_LENGTH), jnp.float32),
        "wc":  s * jax.random.normal(ks[3], (2 * HIDDEN, HIDDEN), jnp.float32),
        "bc":  s * jax.random.normal(ks[4], (1, HIDDEN), jnp.float32),
        "wih": s * jax.random.normal(ks[5], (HIDDEN, 3 * HIDDEN), jnp.float32),
        "bih": s * jax.random.normal(ks[6], (1, 3 * HIDDEN), jnp.float32),
        "whh": s * jax.random.normal(ks[7], (HIDDEN, 3 * HIDDEN), jnp.float32),
        "bhh": s * jax.random.normal(ks[8], (1, 3 * HIDDEN), jnp.float32),
        "wo":  s * jax.random.normal(ks[9], (HIDDEN, OUTPUT), jnp.float32),
        "bo":  s * jax.random.normal(ks[10], (1, OUTPUT), jnp.float32),
    }


def pack_params(p):
    """Pack weights/biases into a [H,768] / [1,512] slab pair (128-lane aligned sections).

    Weight slab columns:
      [  0:128) Wa[emb-part]   [128:160) Wc[emb-part]
      [256:384) Wa[h-part]     [384:480) Whh (r|z|n)
      [512:608) Wih (r|z|n)    [640:704) Wo
    Bias slab columns:
      [0:52) ba, [52:128) -1e30, [128:160) bc,
      [256:288) b_r=bih_r+bhh_r, [288:320) b_z, [320:352) b_in, [352:384) b_hn,
      [384:448) bo, [448:512) -1e30
    Also returns Wc[h-part] ([H,H]) so the wrapper can precompute enc @ Wc[h-part].
    """
    H, L, O = HIDDEN, MAX_LENGTH, OUTPUT
    w = jnp.zeros((H, W_SLAB), jnp.float32)
    w = w.at[:, 0:L].set(p["wa"][0:H, :])                    # attention, emb part
    w = w.at[:, 128:128 + H].set(p["wc"][0:H, :])            # combine,   emb part
    w = w.at[:, 256:256 + L].set(p["wa"][H:2 * H, :])        # attention, h part
    w = w.at[:, 384:384 + 3 * H].set(p["whh"])               # GRU gh (r|z|n)
    w = w.at[:, 512:512 + 3 * H].set(p["wih"])               # GRU gi (r|z|n)
    w = w.at[:, 640:640 + O].set(p["wo"])                    # output head

    b = jnp.zeros((1, B_SLAB), jnp.float32)
    b = b.at[:, 0:L].set(p["ba"])
    b = b.at[:, L:128].set(NEG)                              # mask attention pad lanes
    b = b.at[:, 128:128 + H].set(p["bc"])
    b = b.at[:, 256:256 + H].set(p["bih"][:, 0:H] + p["bhh"][:, 0:H])                  # r
    b = b.at[:, 256 + H:256 + 2 * H].set(p["bih"][:, H:2 * H] + p["bhh"][:, H:2 * H])  # z
    b = b.at[:, 256 + 2 * H:256 + 3 * H].set(p["bih"][:, 2 * H:])                      # gi_n bias
    b = b.at[:, 256 + 3 * H:256 + 4 * H].set(p["bhh"][:, 2 * H:])                      # gh_n bias
    b = b.at[:, 384:384 + O].set(p["bo"])
    b = b.at[:, 384 + O:512].set(NEG)                        # mask output pad lanes

    wc_h = p["wc"][H:2 * H, :]                               # Wc[h-part], fused with enc outside
    return w, b, wc_h


@jax.jit
def attn_decoder_decode(w_slab, b_slab, wc_h, embedding, tokens, hidden, encoder_outputs):
    """Run T teacher-forced decode steps in one grid-less fused pallas_call.

    tokens: int [T]; hidden: [1,1,H]; encoder_outputs: [MAX_LENGTH, H].
    Returns (probs [T,O], logp [T,O], hiddens [T,H], attn_w [T,L]).
    """
    T = tokens.shape[0]
    # Pre-gather embeddings (clip = bounds-safe lookup; semantic diff vs torch's IndexError).
    toks = jnp.clip(tokens.astype(jnp.int32), 0, OUTPUT - 1)
    emb_rows = embedding[toks].astype(jnp.float32)                       # [T, H]
    h0 = hidden.reshape(1, HIDDEN).astype(jnp.float32)
    enc = jnp.zeros((ENC_PAD, HIDDEN), jnp.float32)
    enc = enc.at[:MAX_LENGTH, :].set(encoder_outputs.astype(jnp.float32))
    enc_wc = enc @ wc_h                                                  # [ENC_PAD, H]

    flops = 60_000 * T
    transcendentals = 400 * T
    bytes_accessed = 4 * (w_slab.size + b_slab.size + emb_rows.size
                          + enc_wc.size + h0.size + T * OUT_W)

    out = pl.pallas_call(
        attn_decoder_kernel,
        out_shape=jax.ShapeDtypeStruct((T, OUT_W), jnp.float32),
        in_specs=[pl.BlockSpec(memory_space=pltpu.MemorySpace.VMEM)] * 5,
        out_specs=pl.BlockSpec(memory_space=pltpu.MemorySpace.VMEM),
        scratch_shapes=[pltpu.VMEM((T, 256), jnp.float32),      # batched emb partials
                        pltpu.VMEM((T, HIDDEN), jnp.float32)],  # per-step hidden states
        cost_estimate=pl.CostEstimate(flops=flops,
                                      transcendentals=transcendentals,
                                      bytes_accessed=bytes_accessed),
    )(emb_rows, h0, enc_wc, w_slab, b_slab)

    logp = out[:, 0:OUTPUT]
    attn_w = out[:, 128:128 + MAX_LENGTH]
    hiddens = out[:, 256:256 + HIDDEN]
    probs = jnp.exp(logp)
    return probs, logp, hiddens, attn_w


def attn_decoder_forward(w_slab, b_slab, wc_h, embedding, token, hidden, encoder_outputs):
    """Single decode step, matching AttnDecoderRNN.forward semantics (T=1)."""
    tokens = jnp.asarray(token, jnp.int32).reshape((1,))
    probs, logp, hiddens, attn_w = attn_decoder_decode(
        w_slab, b_slab, wc_h, embedding, tokens, hidden, encoder_outputs)
    # TODO(synk): torch.distributions.Categorical has no Pallas/JAX-array equivalent;
    # return the probabilities (and log-probs) instead of a distribution object.
    return probs, logp, hiddens.reshape(1, 1, HIDDEN), attn_w


def reference_forward(params, token, hidden, encoder_outputs):
    """Pure-JAX per-step reference (mirrors the PyTorch forward, eval mode)."""
    H = HIDDEN
    emb = params["embedding"][token][None, :]
    h = hidden.reshape(1, H)
    cat1 = jnp.concatenate([emb, h], axis=1)
    attn_w = jax.nn.softmax(cat1 @ params["wa"] + params["ba"], axis=1)
    attn_applied = attn_w @ encoder_outputs
    cat2 = jnp.concatenate([emb, attn_applied], axis=1)
    x = jnp.maximum(cat2 @ params["wc"] + params["bc"], 0.0)
    gi = x @ params["wih"] + params["bih"]
    gh = h @ params["whh"] + params["bhh"]
    r = jax.nn.sigmoid(gi[:, :H] + gh[:, :H])
    z = jax.nn.sigmoid(gi[:, H:2 * H] + gh[:, H:2 * H])
    n = jnp.tanh(gi[:, 2 * H:] + r * gh[:, 2 * H:])
    h_new = (1 - z) * n + z * h
    logp = jax.nn.log_softmax(h_new @ params["wo"] + params["bo"], axis=1)
    return logp, h_new.reshape(1, 1, H), attn_w


if __name__ == "__main__":
    key = jax.random.PRNGKey(0)
    kp, ke, kt = jax.random.split(key, 3)
    params = init_params(kp)
    w_slab, b_slab, wc_h = pack_params(params)

    T = 8                                                    # decode steps fused into one call
    tokens = jax.random.randint(kt, (T,), 0, OUTPUT, dtype=jnp.int32)
    hidden0 = jnp.zeros((1, 1, HIDDEN), jnp.float32)         # initHidden()
    encoder_outputs = 0.1 * jax.random.normal(ke, (MAX_LENGTH, HIDDEN), jnp.float32)

    probs, logp, hiddens, attn_w = attn_decoder_decode(
        w_slab, b_slab, wc_h, params["embedding"], tokens, hidden0, encoder_outputs)
    jax.block_until_ready((probs, logp, hiddens, attn_w))

    # Pure-JAX reference: T teacher-forced calls of the per-step module forward.
    ref_logp, ref_h, ref_attn = [], [], []
    h = hidden0
    for t in range(T):
        lp, h, aw = reference_forward(params, int(tokens[t]), h, encoder_outputs)
        ref_logp.append(lp[0])
        ref_h.append(h.reshape(HIDDEN))
        ref_attn.append(aw[0])
    ref_logp = jnp.stack(ref_logp)
    ref_h = jnp.stack(ref_h)
    ref_attn = jnp.stack(ref_attn)

    np.testing.assert_allclose(np.asarray(logp), np.asarray(ref_logp), rtol=1e-3, atol=1e-4)
    np.testing.assert_allclose(np.asarray(hiddens), np.asarray(ref_h), rtol=1e-3, atol=1e-4)
    np.testing.assert_allclose(np.asarray(attn_w), np.asarray(ref_attn), rtol=1e-3, atol=1e-4)
    np.testing.assert_allclose(np.asarray(probs.sum(axis=1)), np.ones(T), rtol=0, atol=1e-4)

    # Single-step API (matches the PyTorch module's call contract; T=1 path).
    p1, lp1, h1, a1 = attn_decoder_forward(
        w_slab, b_slab, wc_h, params["embedding"], int(tokens[0]), hidden0, encoder_outputs)
    jax.block_until_ready((p1, lp1, h1, a1))
    np.testing.assert_allclose(np.asarray(lp1[0]), np.asarray(ref_logp[0]), rtol=1e-3, atol=1e-4)

    print("KERNEL_OK")
</pallas_src>

<mosaic_0001>
module attributes {stable_mosaic.version = 11 : i64} {
  func.func @attn_decoder_kernel(%arg0: memref<8x32xf32, #tpu.memory_space<vmem>>, %arg1: memref<1x32xf32, #tpu.memory_space<vmem>>, %arg2: memref<128x32xf32, #tpu.memory_space<vmem>>, %arg3: memref<32x768xf32, #tpu.memory_space<vmem>>, %arg4: memref<1x512xf32, #tpu.memory_space<vmem>>, %arg5: memref<8x384xf32, #tpu.memory_space<vmem>>, %arg6: memref<8x256xf32, #tpu.memory_space<vmem>>, %arg7: memref<8x32xf32, #tpu.memory_space<vmem>>) attributes {dimension_semantics = [], scalar_prefetch = 0 : i64, scratch_operands = 2 : i64, tpu.core_type = #tpu.core_type<tc>} {
    %c0 = arith.constant 0 : index
    %c256 = arith.constant 256 : index
    %0 = vector.load %arg3[%c0, %c256] : memref<32x768xf32, #tpu.memory_space<vmem>>, vector<32x256xf32>
    %c0_0 = arith.constant 0 : index
    %c512 = arith.constant 512 : index
    %1 = vector.load %arg3[%c0_0, %c512] : memref<32x768xf32, #tpu.memory_space<vmem>>, vector<32x128xf32>
    %c0_1 = arith.constant 0 : index
    %c256_2 = arith.constant 256 : index
    %2 = vector.load %arg4[%c0_1, %c256_2] : memref<1x512xf32, #tpu.memory_space<vmem>>, vector<1x128xf32>
    %c0_3 = arith.constant 0 : index
    %c0_4 = arith.constant 0 : index
    %3 = vector.load %arg2[%c0_3, %c0_4] : memref<128x32xf32, #tpu.memory_space<vmem>>, vector<128x32xf32>
    %c0_5 = arith.constant 0 : index
    %c0_6 = arith.constant 0 : index
    %4 = vector.load %arg0[%c0_5, %c0_6] : memref<8x32xf32, #tpu.memory_space<vmem>>, vector<8x32xf32>
    %c0_7 = arith.constant 0 : index
    %c0_8 = arith.constant 0 : index
    %5 = vector.load %arg3[%c0_7, %c0_8] : memref<32x768xf32, #tpu.memory_space<vmem>>, vector<32x256xf32>
    %cst = arith.constant dense<0.000000e+00> : vector<8x256xf32>
    %6 = tpu.matmul %4, %5, %cst {dimension_numbers = #tpu.dot_dimension_numbers<[1], [0], [0], [1], [0, 0, 1, 1], [], []>} : vector<8x32xf32>, vector<32x256xf32>, vector<8x256xf32> -> vector<8x256xf32>
    %c0_9 = arith.constant 0 : index
    %c0_10 = arith.constant 0 : index
    %7 = vector.load %arg4[%c0_9, %c0_10] : memref<1x512xf32, #tpu.memory_space<vmem>>, vector<1x256xf32>
    %8 = vector.broadcast %7 : vector<1x256xf32> to vector<8x256xf32>
    %9 = arith.addf %6, %8 : vector<8x256xf32>
    %c0_11 = arith.constant 0 : index
    %c0_12 = arith.constant 0 : index
    %10 = vector.load %arg6[%c0_11, %c0_12] : memref<8x256xf32, #tpu.memory_space<vmem>>, vector<8x256xf32>
    tpu.vector_store %arg6[%c0_11, %c0_12], %9 {strides = array<i32>} : memref<8x256xf32, #tpu.memory_space<vmem>>, vector<8x256xf32>,
    %c0_13 = arith.constant 0 : index
    %c0_14 = arith.constant 0 : index
    %11 = vector.load %arg1[%c0_13, %c0_14] : memref<1x32xf32, #tpu.memory_space<vmem>>, vector<1x32xf32>
    %c0_i32 = arith.constant 0 : i32
    %cst_15 = arith.constant dense<0.000000e+00> : vector<1x256xf32>
    %12 = tpu.matmul %11, %0, %cst_15 {dimension_numbers = #tpu.dot_dimension_numbers<[1], [0], [0], [1], [0, 0, 1, 1], [], []>} : vector<1x32xf32>, vector<32x256xf32>, vector<1x256xf32> -> vector<1x256xf32>
    %13 = arith.index_cast %c0_i32 : i32 to index
    %c0_16 = arith.constant 0 : index
    %14 = vector.load %arg6[%13, %c0_16] : memref<8x256xf32, #tpu.memory_space<vmem>>, vector<1x128xf32>
    %15 = vector.extract_strided_slice %12 {offsets = [0, 0], sizes = [1, 128], strides = [1, 1]} : vector<1x256xf32> to vector<1x128xf32>
    %16 = arith.addf %14, %15 : vector<1x128xf32>
    %cst_17 = arith.constant dense<0xFF800000> : vector<1xf32>
    %17 = vector.multi_reduction <maximumf>, %16, %cst_17 [1] : vector<1x128xf32> to vector<1xf32>
    %18 = vector.shape_cast %17 : vector<1xf32> to vector<1x1xf32>
    %19 = vector.broadcast %18 : vector<1x1xf32> to vector<1x128xf32>
    %20 = arith.subf %16, %19 : vector<1x128xf32>
    %21 = math.exp %20 : vector<1x128xf32>
    %cst_18 = arith.constant dense<0.000000e+00> : vector<1xf32>
    %22 = vector.multi_reduction <add>, %21, %cst_18 [1] : vector<1x128xf32> to vector<1xf32>
    %23 = vector.shape_cast %22 : vector<1xf32> to vector<1x1xf32>
    %24 = tpu.reciprocal %23 {approx = true} : vector<1x1xf32> -> vector<1x1xf32>
    %25 = vector.broadcast %24 : vector<1x1xf32> to vector<1x128xf32>
    %26 = arith.mulf %21, %25 : vector<1x128xf32>
    %27 = arith.index_cast %c0_i32 : i32 to index
    %c128 = arith.constant 128 : index
    %28 = vector.load %arg5[%27, %c128] : memref<8x384xf32, #tpu.memory_space<vmem>>, vector<1x128xf32>
    tpu.vector_store %arg5[%27, %c128], %26 {strides = array<i32>} : memref<8x384xf32, #tpu.memory_space<vmem>>, vector<1x128xf32>,
    %29 = arith.index_cast %c0_i32 : i32 to index
    %c128_19 = arith.constant 128 : index
    %30 = vector.load %arg6[%29, %c128_19] : memref<8x256xf32, #tpu.memory_space<vmem>>, vector<1x32xf32>
    %cst_20 = arith.constant dense<0.000000e+00> : vector<1x32xf32>
    %31 = tpu.matmul %26, %3, %cst_20 {dimension_numbers = #tpu.dot_dimension_numbers<[1], [0], [0], [1], [0, 0, 1, 1], [], []>} : vector<1x128xf32>, vector<128x32xf32>, vector<1x32xf32> -> vector<1x32xf32>
    %32 = arith.addf %30, %31 : vector<1x32xf32>
    %cst_21 = arith.constant 0.000000e+00 : f32
    %33 = vector.broadcast %cst_21 : f32 to vector<1x32xf32>
    %34 = arith.maximumf %32, %33 : vector<1x32xf32>
    %cst_22 = arith.constant dense<0.000000e+00> : vector<1x128xf32>
    %35 = tpu.matmul %34, %1, %cst_22 {dimension_numbers = #tpu.dot_dimension_numbers<[1], [0], [0], [1], [0, 0, 1, 1], [], []>} : vector<1x32xf32>, vector<32x128xf32>, vector<1x128xf32> -> vector<1x128xf32>
    %36 = vector.extract_strided_slice %35 {offsets = [0, 0], sizes = [1, 32], strides = [1, 1]} : vector<1x128xf32> to vector<1x32xf32>
    %37 = vector.extract_strided_slice %12 {offsets = [0, 128], sizes = [1, 32], strides = [1, 1]} : vector<1x256xf32> to vector<1x32xf32>
    %38 = arith.addf %36, %37 : vector<1x32xf32>
    %39 = vector.extract_strided_slice %2 {offsets = [0, 0], sizes = [1, 32], strides = [1, 1]} : vector<1x128xf32> to vector<1x32xf32>
    %40 = arith.addf %38, %39 : vector<1x32xf32>
    %41 = arith.negf %40 : vector<1x32xf32>
    %42 = math.exp %41 : vector<1x32xf32>
    %cst_23 = arith.constant 1.000000e+00 : f32
    %43 = vector.broadcast %cst_23 : f32 to vector<1x32xf32>
    %44 = arith.addf %43, %42 : vector<1x32xf32>
    %45 = arith.divf %43, %44 : vector<1x32xf32>
    %46 = vector.extract_strided_slice %35 {offsets = [0, 32], sizes = [1, 32], strides = [1, 1]} : vector<1x128xf32> to vector<1x32xf32>
    %47 = vector.extract_strided_slice %12 {offsets = [0, 160], sizes = [1, 32], strides = [1, 1]} : vector<1x256xf32> to vector<1x32xf32>
    %48 = arith.addf %46, %47 : vector<1x32xf32>
    %49 = vector.extract_strided_slice %2 {offsets = [0, 32], sizes = [1, 32], strides = [1, 1]} : vector<1x128xf32> to vector<1x32xf32>
    %50 = arith.addf %48, %49 : vector<1x32xf32>
    %51 = arith.negf %50 : vector<1x32xf32>
    %52 = math.exp %51 : vector<1x32xf32>
    %cst_24 = arith.constant 1.000000e+00 : f32
    %53 = vector.broadcast %cst_24 : f32 to vector<1x32xf32>
    %54 = arith.addf %53, %52 : vector<1x32xf32>
    %55 = arith.divf %53, %54 : vector<1x32xf32>
    %56 = vector.extract_strided_slice %35 {offsets = [0, 64], sizes = [1, 32], strides = [1, 1]} : vector<1x128xf32> to vector<1x32xf32>
    %57 = vector.extract_strided_slice %2 {offsets = [0, 64], sizes = [1, 32], strides = [1, 1]} : vector<1x128xf32> to vector<1x32xf32>
    %58 = arith.addf %56, %57 : vector<1x32xf32>
    %59 = vector.extract_strided_slice %12 {offsets = [0, 192], sizes = [1, 32], strides = [1, 1]} : vector<1x256xf32> to vector<1x32xf32>
    %60 = vector.extract_strided_slice %2 {offsets = [0, 96], sizes = [1, 32], strides = [1, 1]} : vector<1x128xf32> to vector<1x32xf32>
    %61 = arith.addf %59, %60 : vector<1x32xf32>
    %62 = arith.mulf %45, %61 : vector<1x32xf32>
    %63 = arith.addf %58, %62 : vector<1x32xf32>
    %64 = math.tanh %63 : vector<1x32xf32>
    %cst_25 = arith.constant 1.000000e+00 : f32
    %65 = vector.broadcast %cst_25 : f32 to vector<1x32xf32>
    %66 = arith.subf %65, %55 : vector<1x32xf32>
    %67 = arith.mulf %66, %64 : vector<1x32xf32>
    %68 = arith.mulf %55, %11 : vector<1x32xf32>
    %69 = arith.addf %67, %68 : vector<1x32xf32>
    %70 = arith.index_cast %c0_i32 : i32 to index
    %c0_26 = arith.constant 0 : index
    %71 = vector.load %arg7[%70, %c0_26] : memref<8x32xf32, #tpu.memory_space<vmem>>, vector<1x32xf32>
    tpu.vector_store %arg7[%70, %c0_26], %69 {strides = array<i32>} : memref<8x32xf32, #tpu.memory_space<vmem>>, vector<1x32xf32>,
    %c1_i32 = arith.constant 1 : i32
    %cst_27 = arith.constant dense<0.000000e+00> : vector<1x256xf32>
    %72 = tpu.matmul %69, %0, %cst_27 {dimension_numbers = #tpu.dot_dimension_numbers<[1], [0], [0], [1], [0, 0, 1, 1], [], []>} : vector<1x32xf32>, vector<32x256xf32>, vector<1x256xf32> -> vector<1x256xf32>
    %73 = arith.index_cast %c1_i32 : i32 to index
    %c0_28 = arith.constant 0 : index
    %74 = vector.load %arg6[%73, %c0_28] : memref<8x256xf32, #tpu.memory_space<vmem>>, vector<1x128xf32>
    %75 = vector.extract_strided_slice %72 {offsets = [0, 0], sizes = [1, 128], strides = [1, 1]} : vector<1x256xf32> to vector<1x128xf32>
    %76 = arith.addf %74, %75 : vector<1x128xf32>
    %cst_29 = arith.constant dense<0xFF800000> : vector<1xf32>
    %77 = vector.multi_reduction <maximumf>, %76, %cst_29 [1] : vector<1x128xf32> to vector<1xf32>
    %78 = vector.shape_cast %77 : vector<1xf32> to vector<1x1xf32>
    %79 = vector.broadcast %78 : vector<1x1xf32> to vector<1x128xf32>
    %80 = arith.subf %76, %79 : vector<1x128xf32>
    %81 = math.exp %80 : vector<1x128xf32>
    %cst_30 = arith.constant dense<0.000000e+00> : vector<1xf32>
    %82 = vector.multi_reduction <add>, %81, %cst_30 [1] : vector<1x128xf32> to vector<1xf32>
    %83 = vector.shape_cast %82 : vector<1xf32> to vector<1x1xf32>
    %84 = tpu.reciprocal %83 {approx = true} : vector<1x1xf32> -> vector<1x1xf32>
    %85 = vector.broadcast %84 : vector<1x1xf32> to vector<1x128xf32>
    %86 = arith.mulf %81, %85 : vector<1x128xf32>
    %87 = arith.index_cast %c1_i32 : i32 to index
    %c128_31 = arith.constant 128 : index
    %88 = vector.load %arg5[%87, %c128_31] : memref<8x384xf32, #tpu.memory_space<vmem>>, vector<1x128xf32>
    tpu.vector_store %arg5[%87, %c128_31], %86 {strides = array<i32>} : memref<8x384xf32, #tpu.memory_space<vmem>>, vector<1x128xf32>,
    %89 = arith.index_cast %c1_i32 : i32 to index
    %c128_32 = arith.constant 128 : index
    %90 = vector.load %arg6[%89, %c128_32] : memref<8x256xf32, #tpu.memory_space<vmem>>, vector<1x32xf32>
    %cst_33 = arith.constant dense<0.000000e+00> : vector<1x32xf32>
    %91 = tpu.matmul %86, %3, %cst_33 {dimension_numbers = #tpu.dot_dimension_numbers<[1], [0], [0], [1], [0, 0, 1, 1], [], []>} : vector<1x128xf32>, vector<128x32xf32>, vector<1x32xf32> -> vector<1x32xf32>
    %92 = arith.addf %90, %91 : vector<1x32xf32>
    %cst_34 = arith.constant 0.000000e+00 : f32
    %93 = vector.broadcast %cst_34 : f32 to vector<1x32xf32>
    %94 = arith.maximumf %92, %93 : vector<1x32xf32>
    %cst_35 = arith.constant dense<0.000000e+00> : vector<1x128xf32>
    %95 = tpu.matmul %94, %1, %cst_35 {dimension_numbers = #tpu.dot_dimension_numbers<[1], [0], [0], [1], [0, 0, 1, 1], [], []>} : vector<1x32xf32>, vector<32x128xf32>, vector<1x128xf32> -> vector<1x128xf32>
    %96 = vector.extract_strided_slice %95 {offsets = [0, 0], sizes = [1, 32], strides = [1, 1]} : vector<1x128xf32> to vector<1x32xf32>
    %97 = vector.extract_strided_slice %72 {offsets = [0, 128], sizes = [1, 32], strides = [1, 1]} : vector<1x256xf32> to vector<1x32xf32>
    %98 = arith.addf %96, %97 : vector<1x32xf32>
    %99 = vector.extract_strided_slice %2 {offsets = [0, 0], sizes = [1, 32], strides = [1, 1]} : vector<1x128xf32> to vector<1x32xf32>
    %100 = arith.addf %98, %99 : vector<1x32xf32>
    %101 = arith.negf %100 : vector<1x32xf32>
    %102 = math.exp %101 : vector<1x32xf32>
    %cst_36 = arith.constant 1.000000e+00 : f32
    %103 = vector.broadcast %cst_36 : f32 to vector<1x32xf32>
    %104 = arith.addf %103, %102 : vector<1x32xf32>
    %105 = arith.divf %103, %104 : vector<1x32xf32>
    %106 = vector.extract_strided_slice %95 {offsets = [0, 32], sizes = [1, 32], strides = [1, 1]} : vector<1x128xf32> to vector<1x32xf32>
    %107 = vector.extract_strided_slice %72 {offsets = [0, 160], sizes = [1, 32], strides = [1, 1]} : vector<1x256xf32> to vector<1x32xf32>
    %108 = arith.addf %106, %107 : vector<1x32xf32>
    %109 = vector.extract_strided_slice %2 {offsets = [0, 32], sizes = [1, 32], strides = [1, 1]} : vector<1x128xf32> to vector<1x32xf32>
    %110 = arith.addf %108, %109 : vector<1x32xf32>
    %111 = arith.negf %110 : vector<1x32xf32>
    %112 = math.exp %111 : vector<1x32xf32>
    %cst_37 = arith.constant 1.000000e+00 : f32
    %113 = vector.broadcast %cst_37 : f32 to vector<1x32xf32>
    %114 = arith.addf %113, %112 : vector<1x32xf32>
    %115 = arith.divf %113, %114 : vector<1x32xf32>
    %116 = vector.extract_strided_slice %95 {offsets = [0, 64], sizes = [1, 32], strides = [1, 1]} : vector<1x128xf32> to vector<1x32xf32>
    %117 = vector.extract_strided_slice %2 {offsets = [0, 64], sizes = [1, 32], strides = [1, 1]} : vector<1x128xf32> to vector<1x32xf32>
    %118 = arith.addf %116, %117 : vector<1x32xf32>
    %119 = vector.extract_strided_slice %72 {offsets = [0, 192], sizes = [1, 32], strides = [1, 1]} : vector<1x256xf32> to vector<1x32xf32>
    %120 = vector.extract_strided_slice %2 {offsets = [0, 96], sizes = [1, 32], strides = [1, 1]} : vector<1x128xf32> to vector<1x32xf32>
    %121 = arith.addf %119, %120 : vector<1x32xf32>
    %122 = arith.mulf %105, %121 : vector<1x32xf32>
    %123 = arith.addf %118, %122 : vector<1x32xf32>
    %124 = math.tanh %123 : vector<1x32xf32>
    %cst_38 = arith.constant 1.000000e+00 : f32
    %125 = vector.broadcast %cst_38 : f32 to vector<1x32xf32>
    %126 = arith.subf %125, %115 : vector<1x32xf32>
    %127 = arith.mulf %126, %124 : vector<1x32xf32>
    %128 = arith.mulf %115, %69 : vector<1x32xf32>
    %129 = arith.addf %127, %128 : vector<1x32xf32>
    %130 = arith.index_cast %c1_i32 : i32 to index
    %c0_39 = arith.constant 0 : index
    %131 = vector.load %arg7[%130, %c0_39] : memref<8x32xf32, #tpu.memory_space<vmem>>, vector<1x32xf32>
    tpu.vector_store %arg7[%130, %c0_39], %129 {strides = array<i32>} : memref<8x32xf32, #tpu.memory_space<vmem>>, vector<1x32xf32>,
    %c2_i32 = arith.constant 2 : i32
    %cst_40 = arith.constant dense<0.000000e+00> : vector<1x256xf32>
    %132 = tpu.matmul %129, %0, %cst_40 {dimension_numbers = #tpu.dot_dimension_numbers<[1], [0], [0], [1], [0, 0, 1, 1], [], []>} : vector<1x32xf32>, vector<32x256xf32>, vector<1x256xf32> -> vector<1x256xf32>
    %133 = arith.index_cast %c2_i32 : i32 to index
    %c0_41 = arith.constant 0 : index
    %134 = vector.load %arg6[%133, %c0_41] : memref<8x256xf32, #tpu.memory_space<vmem>>, vector<1x128xf32>
    %135 = vector.extract_strided_slice %132 {offsets = [0, 0], sizes = [1, 128], strides = [1, 1]} : vector<1x256xf32> to vector<1x128xf32>
    %136 = arith.addf %134, %135 : vector<1x128xf32>
    %cst_42 = arith.constant dense<0xFF800000> : vector<1xf32>
    %137 = vector.multi_reduction <maximumf>, %136, %cst_42 [1] : vector<1x128xf32> to vector<1xf32>
    %138 = vector.shape_cast %137 : vector<1xf32> to vector<1x1xf32>
    %139 = vector.broadcast %138 : vector<1x1xf32> to vector<1x128xf32>
    %140 = arith.subf %136, %139 : vector<1x128xf32>
    %141 = math.exp %140 : vector<1x128xf32>
    %cst_43 = arith.constant dense<0.000000e+00> : vector<1xf32>
    %142 = vector.multi_reduction <add>, %141, %cst_43 [1] : vector<1x128xf32> to vector<1xf32>
    %143 = vector.shape_cast %142 : vector<1xf32> to vector<1x1xf32>
    %144 = tpu.reciprocal %143 {approx = true} : vector<1x1xf32> -> vector<1x1xf32>
    %145 = vector.broadcast %144 : vector<1x1xf32> to vector<1x128xf32>
    %146 = arith.mulf %141, %145 : vector<1x128xf32>
    %147 = arith.index_cast %c2_i32 : i32 to index
    %c128_44 = arith.constant 128 : index
    %148 = vector.load %arg5[%147, %c128_44] : memref<8x384xf32, #tpu.memory_space<vmem>>, vector<1x128xf32>
    tpu.vector_store %arg5[%147, %c128_44], %146 {strides = array<i32>} : memref<8x384xf32, #tpu.memory_space<vmem>>, vector<1x128xf32>,
    %149 = arith.index_cast %c2_i32 : i32 to index
    %c128_45 = arith.constant 128 : index
    %150 = vector.load %arg6[%149, %c128_45] : memref<8x256xf32, #tpu.memory_space<vmem>>, vector<1x32xf32>
    %cst_46 = arith.constant dense<0.000000e+00> : vector<1x32xf32>
    %151 = tpu.matmul %146, %3, %cst_46 {dimension_numbers = #tpu.dot_dimension_numbers<[1], [0], [0], [1], [0, 0, 1, 1], [], []>} : vector<1x128xf32>, vector<128x32xf32>, vector<1x32xf32> -> vector<1x32xf32>
    %152 = arith.addf %150, %151 : vector<1x32xf32>
    %cst_47 = arith.constant 0.000000e+00 : f32
    %153 = vector.broadcast %cst_47 : f32 to vector<1x32xf32>
    %154 = arith.maximumf %152, %153 : vector<1x32xf32>
    %cst_48 = arith.constant dense<0.000000e+00> : vector<1x128xf32>
    %155 = tpu.matmul %154, %1, %cst_48 {dimension_numbers = #tpu.dot_dimension_numbers<[1], [0], [0], [1], [0, 0, 1, 1], [], []>} : vector<1x32xf32>, vector<32x128xf32>, vector<1x128xf32> -> vector<1x128xf32>
    %156 = vector.extract_strided_slice %155 {offsets = [0, 0], sizes = [1, 32], strides = [1, 1]} : vector<1x128xf32> to vector<1x32xf32>
    %157 = vector.extract_strided_slice %132 {offsets = [0, 128], sizes = [1, 32], strides = [1, 1]} : vector<1x256xf32> to vector<1x32xf32>
    %158 = arith.addf %156, %157 : vector<1x32xf32>
    %159 = vector.extract_strided_slice %2 {offsets = [0, 0], sizes = [1, 32], strides = [1, 1]} : vector<1x128xf32> to vector<1x32xf32>
    %160 = arith.addf %158, %159 : vector<1x32xf32>
    %161 = arith.negf %160 : vector<1x32xf32>
    %162 = math.exp %161 : vector<1x32xf32>
    %cst_49 = arith.constant 1.000000e+00 : f32
    %163 = vector.broadcast %cst_49 : f32 to vector<1x32xf32>
    %164 = arith.addf %163, %162 : vector<1x32xf32>
    %165 = arith.divf %163, %164 : vector<1x32xf32>
    %166 = vector.extract_strided_slice %155 {offsets = [0, 32], sizes = [1, 32], strides = [1, 1]} : vector<1x128xf32> to vector<1x32xf32>
    %167 = vector.extract_strided_slice %132 {offsets = [0, 160], sizes = [1, 32], strides = [1, 1]} : vector<1x256xf32> to vector<1x32xf32>
    %168 = arith.addf %166, %167 : vector<1x32xf32>
    %169 = vector.extract_strided_slice %2 {offsets = [0, 32], sizes = [1, 32], strides = [1, 1]} : vector<1x128xf32> to vector<1x32xf32>
    %170 = arith.addf %168, %169 : vector<1x32xf32>
    %171 = arith.negf %170 : vector<1x32xf32>
    %172 = math.exp %171 : vector<1x32xf32>
    %cst_50 = arith.constant 1.000000e+00 : f32
    %173 = vector.broadcast %cst_50 : f32 to vector<1x32xf32>
    %174 = arith.addf %173, %172 : vector<1x32xf32>
    %175 = arith.divf %173, %174 : vector<1x32xf32>
    %176 = vector.extract_strided_slice %155 {offsets = [0, 64], sizes = [1, 32], strides = [1, 1]} : vector<1x128xf32> to vector<1x32xf32>
    %177 = vector.extract_strided_slice %2 {offsets = [0, 64], sizes = [1, 32], strides = [1, 1]} : vector<1x128xf32> to vector<1x32xf32>
    %178 = arith.addf %176, %177 : vector<1x32xf32>
    %179 = vector.extract_strided_slice %132 {offsets = [0, 192], sizes = [1, 32], strides = [1, 1]} : vector<1x256xf32> to vector<1x32xf32>
    %180 = vector.extract_strided_slice %2 {offsets = [0, 96], sizes = [1, 32], strides = [1, 1]} : vector<1x128xf32> to vector<1x32xf32>
    %181 = arith.addf %179, %180 : vector<1x32xf32>
    %182 = arith.mulf %165, %181 : vector<1x32xf32>
    %183 = arith.addf %178, %182 : vector<1x32xf32>
    %184 = math.tanh %183 : vector<1x32xf32>
    %cst_51 = arith.constant 1.000000e+00 : f32
    %185 = vector.broadcast %cst_51 : f32 to vector<1x32xf32>
    %186 = arith.subf %185, %175 : vector<1x32xf32>
    %187 = arith.mulf %186, %184 : vector<1x32xf32>
    %188 = arith.mulf %175, %129 : vector<1x32xf32>
    %189 = arith.addf %187, %188 : vector<1x32xf32>
    %190 = arith.index_cast %c2_i32 : i32 to index
    %c0_52 = arith.constant 0 : index
    %191 = vector.load %arg7[%190, %c0_52] : memref<8x32xf32, #tpu.memory_space<vmem>>, vector<1x32xf32>
    tpu.vector_store %arg7[%190, %c0_52], %189 {strides = array<i32>} : memref<8x32xf32, #tpu.memory_space<vmem>>, vector<1x32xf32>,
    %c3_i32 = arith.constant 3 : i32
    %cst_53 = arith.constant dense<0.000000e+00> : vector<1x256xf32>
    %192 = tpu.matmul %189, %0, %cst_53 {dimension_numbers = #tpu.dot_dimension_numbers<[1], [0], [0], [1], [0, 0, 1, 1], [], []>} : vector<1x32xf32>, vector<32x256xf32>, vector<1x256xf32> -> vector<1x256xf32>
    %193 = arith.index_cast %c3_i32 : i32 to index
    %c0_54 = arith.constant 0 : index
    %194 = vector.load %arg6[%193, %c0_54] : memref<8x256xf32, #tpu.memory_space<vmem>>, vector<1x128xf32>
    %195 = vector.extract_strided_slice %192 {offsets = [0, 0], sizes = [1, 128], strides = [1, 1]} : vector<1x256xf32> to vector<1x128xf32>
    %196 = arith.addf %194, %195 : vector<1x128xf32>
    %cst_55 = arith.constant dense<0xFF800000> : vector<1xf32>
    %197 = vector.multi_reduction <maximumf>, %196, %cst_55 [1] : vector<1x128xf32> to vector<1xf32>
    %198 = vector.shape_cast %197 : vector<1xf32> to vector<1x1xf32>
    %199 = vector.broadcast %198 : vector<1x1xf32> to vector<1x128xf32>
    %200 = arith.subf %196, %199 : vector<1x128xf32>
    %201 = math.exp %200 : vector<1x128xf32>
    %cst_56 = arith.constant dense<0.000000e+00> : vector<1xf32>
    %202 = vector.multi_reduction <add>, %201, %cst_56 [1] : vector<1x128xf32> to vector<1xf32>
    %203 = vector.shape_cast %202 : vector<1xf32> to vector<1x1xf32>
    %204 = tpu.reciprocal %203 {approx = true} : vector<1x1xf32> -> vector<1x1xf32>
    %205 = vector.broadcast %204 : vector<1x1xf32> to vector<1x128xf32>
    %206 = arith.mulf %201, %205 : vector<1x128xf32>
    %207 = arith.index_cast %c3_i32 : i32 to index
    %c128_57 = arith.constant 128 : index
    %208 = vector.load %arg5[%207, %c128_57] : memref<8x384xf32, #tpu.memory_space<vmem>>, vector<1x128xf32>
    tpu.vector_store %arg5[%207, %c128_57], %206 {strides = array<i32>} : memref<8x384xf32, #tpu.memory_space<vmem>>, vector<1x128xf32>,
    %209 = arith.index_cast %c3_i32 : i32 to index
    %c128_58 = arith.constant 128 : index
    %210 = vector.load %arg6[%209, %c128_58] : memref<8x256xf32, #tpu.memory_space<vmem>>, vector<1x32xf32>
    %cst_59 = arith.constant dense<0.000000e+00> : vector<1x32xf32>
    %211 = tpu.matmul %206, %3, %cst_59 {dimension_numbers = #tpu.dot_dimension_numbers<[1], [0], [0], [1], [0, 0, 1, 1], [], []>} : vector<1x128xf32>, vector<128x32xf32>, vector<1x32xf32> -> vector<1x32xf32>
    %212 = arith.addf %210, %211 : vector<1x32xf32>
    %cst_60 = arith.constant 0.000000e+00 : f32
    %213 = vector.broadcast %cst_60 : f32 to vector<1x32xf32>
    %214 = arith.maximumf %212, %213 : vector<1x32xf32>
    %cst_61 = arith.constant dense<0.000000e+00> : vector<1x128xf32>
    %215 = tpu.matmul %214, %1, %cst_61 {dimension_numbers = #tpu.dot_dimension_numbers<[1], [0], [0], [1], [0, 0, 1, 1], [], []>} : vector<1x32xf32>, vector<32x128xf32>, vector<1x128xf32> -> vector<1x128xf32>
    %216 = vector.extract_strided_slice %215 {offsets = [0, 0], sizes = [1, 32], strides = [1, 1]} : vector<1x128xf32> to vector<1x32xf32>
    %217 = vector.extract_strided_slice %192 {offsets = [0, 128], sizes = [1, 32], strides = [1, 1]} : vector<1x256xf32> to vector<1x32xf32>
    %218 = arith.addf %216, %217 : vector<1x32xf32>
    %219 = vector.extract_strided_slice %2 {offsets = [0, 0], sizes = [1, 32], strides = [1, 1]} : vector<1x128xf32> to vector<1x32xf32>
    %220 = arith.addf %218, %219 : vector<1x32xf32>
    %221 = arith.negf %220 : vector<1x32xf32>
    %222 = math.exp %221 : vector<1x32xf32>
    %cst_62 = arith.constant 1.000000e+00 : f32
    %223 = vector.broadcast %cst_62 : f32 to vector<1x32xf32>
    %224 = arith.addf %223, %222 : vector<1x32xf32>
    %225 = arith.divf %223, %224 : vector<1x32xf32>
    %226 = vector.extract_strided_slice %215 {offsets = [0, 32], sizes = [1, 32], strides = [1, 1]} : vector<1x128xf32> to vector<1x32xf32>
    %227 = vector.extract_strided_slice %192 {offsets = [0, 160], sizes = [1, 32], strides = [1, 1]} : vector<1x256xf32> to vector<1x32xf32>
    %228 = arith.addf %226, %227 : vector<1x32xf32>
    %229 = vector.extract_strided_slice %2 {offsets = [0, 32], sizes = [1, 32], strides = [1, 1]} : vector<1x128xf32> to vector<1x32xf32>
    %230 = arith.addf %228, %229 : vector<1x32xf32>
    %231 = arith.negf %230 : vector<1x32xf32>
    %232 = math.exp %231 : vector<1x32xf32>
    %cst_63 = arith.constant 1.000000e+00 : f32
    %233 = vector.broadcast %cst_63 : f32 to vector<1x32xf32>
    %234 = arith.addf %233, %232 : vector<1x32xf32>
    %235 = arith.divf %233, %234 : vector<1x32xf32>
    %236 = vector.extract_strided_slice %215 {offsets = [0, 64], sizes = [1, 32], strides = [1, 1]} : vector<1x128xf32> to vector<1x32xf32>
    %237 = vector.extract_strided_slice %2 {offsets = [0, 64], sizes = [1, 32], strides = [1, 1]} : vector<1x128xf32> to vector<1x32xf32>
    %238 = arith.addf %236, %237 : vector<1x32xf32>
    %239 = vector.extract_strided_slice %192 {offsets = [0, 192], sizes = [1, 32], strides = [1, 1]} : vector<1x256xf32> to vector<1x32xf32>
    %240 = vector.extract_strided_slice %2 {offsets = [0, 96], sizes = [1, 32], strides = [1, 1]} : vector<1x128xf32> to vector<1x32xf32>
    %241 = arith.addf %239, %240 : vector<1x32xf32>
    %242 = arith.mulf %225, %241 : vector<1x32xf32>
    %243 = arith.addf %238, %242 : vector<1x32xf32>
    %244 = math.tanh %243 : vector<1x32xf32>
    %cst_64 = arith.constant 1.000000e+00 : f32
    %245 = vector.broadcast %cst_64 : f32 to vector<1x32xf32>
    %246 = arith.subf %245, %235 : vector<1x32xf32>
    %247 = arith.mulf %246, %244 : vector<1x32xf32>
    %248 = arith.mulf %235, %189 : vector<1x32xf32>
    %249 = arith.addf %247, %248 : vector<1x32xf32>
    %250 = arith.index_cast %c3_i32 : i32 to index
    %c0_65 = arith.constant 0 : index
    %251 = vector.load %arg7[%250, %c0_65] : memref<8x32xf32, #tpu.memory_space<vmem>>, vector<1x32xf32>
    tpu.vector_store %arg7[%250, %c0_65], %249 {strides = array<i32>} : memref<8x32xf32, #tpu.memory_space<vmem>>, vector<1x32xf32>,
    %c4_i32 = arith.constant 4 : i32
    %cst_66 = arith.constant dense<0.000000e+00> : vector<1x256xf32>
    %252 = tpu.matmul %249, %0, %cst_66 {dimension_numbers = #tpu.dot_dimension_numbers<[1], [0], [0], [1], [0, 0, 1, 1], [], []>} : vector<1x32xf32>, vector<32x256xf32>, vector<1x256xf32> -> vector<1x256xf32>
    %253 = arith.index_cast %c4_i32 : i32 to index
    %c0_67 = arith.constant 0 : index
    %254 = vector.load %arg6[%253, %c0_67] : memref<8x256xf32, #tpu.memory_space<vmem>>, vector<1x128xf32>
    %255 = vector.extract_strided_slice %252 {offsets = [0, 0], sizes = [1, 128], strides = [1, 1]} : vector<1x256xf32> to vector<1x128xf32>
    %256 = arith.addf %254, %255 : vector<1x128xf32>
    %cst_68 = arith.constant dense<0xFF800000> : vector<1xf32>
    %257 = vector.multi_reduction <maximumf>, %256, %cst_68 [1] : vector<1x128xf32> to vector<1xf32>
    %258 = vector.shape_cast %257 : vector<1xf32> to vector<1x1xf32>
    %259 = vector.broadcast %258 : vector<1x1xf32> to vector<1x128xf32>
    %260 = arith.subf %256, %259 : vector<1x128xf32>
    %261 = math.exp %260 : vector<1x128xf32>
    %cst_69 = arith.constant dense<0.000000e+00> : vector<1xf32>
    %262 = vector.multi_reduction <add>, %261, %cst_69 [1] : vector<1x128xf32> to vector<1xf32>
    %263 = vector.shape_cast %262 : vector<1xf32> to vector<1x1xf32>
    %264 = tpu.reciprocal %263 {approx = true} : vector<1x1xf32> -> vector<1x1xf32>
    %265 = vector.broadcast %264 : vector<1x1xf32> to vector<1x128xf32>
    %266 = arith.mulf %261, %265 : vector<1x128xf32>
    %267 = arith.index_cast %c4_i32 : i32 to index
    %c128_70 = arith.constant 128 : index
    %268 = vector.load %arg5[%267, %c128_70] : memref<8x384xf32, #tpu.memory_space<vmem>>, vector<1x128xf32>
    tpu.vector_store %arg5[%267, %c128_70], %266 {strides = array<i32>} : memref<8x384xf32, #tpu.memory_space<vmem>>, vector<1x128xf32>,
    %269 = arith.index_cast %c4_i32 : i32 to index
    %c128_71 = arith.constant 128 : index
    %270 = vector.load %arg6[%269, %c128_71] : memref<8x256xf32, #tpu.memory_space<vmem>>, vector<1x32xf32>
    %cst_72 = arith.constant dense<0.000000e+00> : vector<1x32xf32>
    %271 = tpu.matmul %266, %3, %cst_72 {dimension_numbers = #tpu.dot_dimension_numbers<[1], [0], [0], [1], [0, 0, 1, 1], [], []>} : vector<1x128xf32>, vector<128x32xf32>, vector<1x32xf32> -> vector<1x32xf32>
    %272 = arith.addf %270, %271 : vector<1x32xf32>
    %cst_73 = arith.constant 0.000000e+00 : f32
    %273 = vector.broadcast %cst_73 : f32 to vector<1x32xf32>
    %274 = arith.maximumf %272, %273 : vector<1x32xf32>
    %cst_74 = arith.constant dense<0.000000e+00> : vector<1x128xf32>
    %275 = tpu.matmul %274, %1, %cst_74 {dimension_numbers = #tpu.dot_dimension_numbers<[1], [0], [0], [1], [0, 0, 1, 1], [], []>} : vector<1x32xf32>, vector<32x128xf32>, vector<1x128xf32> -> vector<1x128xf32>
    %276 = vector.extract_strided_slice %275 {offsets = [0, 0], sizes = [1, 32], strides = [1, 1]} : vector<1x128xf32> to vector<1x32xf32>
    %277 = vector.extract_strided_slice %252 {offsets = [0, 128], sizes = [1, 32], strides = [1, 1]} : vector<1x256xf32> to vector<1x32xf32>
    %278 = arith.addf %276, %277 : vector<1x32xf32>
    %279 = vector.extract_strided_slice %2 {offsets = [0, 0], sizes = [1, 32], strides = [1, 1]} : vector<1x128xf32> to vector<1x32xf32>
    %280 = arith.addf %278, %279 : vector<1x32xf32>
    %281 = arith.negf %280 : vector<1x32xf32>
    %282 = math.exp %281 : vector<1x32xf32>
    %cst_75 = arith.constant 1.000000e+00 : f32
    %283 = vector.broadcast %cst_75 : f32 to vector<1x32xf32>
    %284 = arith.addf %283, %282 : vector<1x32xf32>
    %285 = arith.divf %283, %284 : vector<1x32xf32>
    %286 = vector.extract_strided_slice %275 {offsets = [0, 32], sizes = [1, 32], strides = [1, 1]} : vector<1x128xf32> to vector<1x32xf32>
    %287 = vector.extract_strided_slice %252 {offsets = [0, 160], sizes = [1, 32], strides = [1, 1]} : vector<1x256xf32> to vector<1x32xf32>
    %288 = arith.addf %286, %287 : vector<1x32xf32>
    %289 = vector.extract_strided_slice %2 {offsets = [0, 32], sizes = [1, 32], strides = [1, 1]} : vector<1x128xf32> to vector<1x32xf32>
    %290 = arith.addf %288, %289 : vector<1x32xf32>
    %291 = arith.negf %290 : vector<1x32xf32>
    %292 = math.exp %291 : vector<1x32xf32>
    %cst_76 = arith.constant 1.000000e+00 : f32
    %293 = vector.broadcast %cst_76 : f32 to vector<1x32xf32>
    %294 = arith.addf %293, %292 : vector<1x32xf32>
    %295 = arith.divf %293, %294 : vector<1x32xf32>
    %296 = vector.extract_strided_slice %275 {offsets = [0, 64], sizes = [1, 32], strides = [1, 1]} : vector<1x128xf32> to vector<1x32xf32>
    %297 = vector.extract_strided_slice %2 {offsets = [0, 64], sizes = [1, 32], strides = [1, 1]} : vector<1x128xf32> to vector<1x32xf32>
    %298 = arith.addf %296, %297 : vector<1x32xf32>
    %299 = vector.extract_strided_slice %252 {offsets = [0, 192], sizes = [1, 32], strides = [1, 1]} : vector<1x256xf32> to vector<1x32xf32>
    %300 = vector.extract_strided_slice %2 {offsets = [0, 96], sizes = [1, 32], strides = [1, 1]} : vector<1x128xf32> to vector<1x32xf32>
    %301 = arith.addf %299, %300 : vector<1x32xf32>
    %302 = arith.mulf %285, %301 : vector<1x32xf32>
    %303 = arith.addf %298, %302 : vector<1x32xf32>
    %304 = math.tanh %303 : vector<1x32xf32>
    %cst_77 = arith.constant 1.000000e+00 : f32
    %305 = vector.broadcast %cst_77 : f32 to vector<1x32xf32>
    %306 = arith.subf %305, %295 : vector<1x32xf32>
    %307 = arith.mulf %306, %304 : vector<1x32xf32>
    %308 = arith.mulf %295, %249 : vector<1x32xf32>
    %309 = arith.addf %307, %308 : vector<1x32xf32>
    %310 = arith.index_cast %c4_i32 : i32 to index
    %c0_78 = arith.constant 0 : index
    %311 = vector.load %arg7[%310, %c0_78] : memref<8x32xf32, #tpu.memory_space<vmem>>, vector<1x32xf32>
    tpu.vector_store %arg7[%310, %c0_78], %309 {strides = array<i32>} : memref<8x32xf32, #tpu.memory_space<vmem>>, vector<1x32xf32>,
    %c5_i32 = arith.constant 5 : i32
    %cst_79 = arith.constant dense<0.000000e+00> : vector<1x256xf32>
    %312 = tpu.matmul %309, %0, %cst_79 {dimension_numbers = #tpu.dot_dimension_numbers<[1], [0], [0], [1], [0, 0, 1, 1], [], []>} : vector<1x32xf32>, vector<32x256xf32>, vector<1x256xf32> -> vector<1x256xf32>
    %313 = arith.index_cast %c5_i32 : i32 to index
    %c0_80 = arith.constant 0 : index
    %314 = vector.load %arg6[%313, %c0_80] : memref<8x256xf32, #tpu.memory_space<vmem>>, vector<1x128xf32>
    %315 = vector.extract_strided_slice %312 {offsets = [0, 0], sizes = [1, 128], strides = [1, 1]} : vector<1x256xf32> to vector<1x128xf32>
    %316 = arith.addf %314, %315 : vector<1x128xf32>
    %cst_81 = arith.constant dense<0xFF800000> : vector<1xf32>
    %317 = vector.multi_reduction <maximumf>, %316, %cst_81 [1] : vector<1x128xf32> to vector<1xf32>
    %318 = vector.shape_cast %317 : vector<1xf32> to vector<1x1xf32>
    %319 = vector.broadcast %318 : vector<1x1xf32> to vector<1x128xf32>
    %320 = arith.subf %316, %319 : vector<1x128xf32>
    %321 = math.exp %320 : vector<1x128xf32>
    %cst_82 = arith.constant dense<0.000000e+00> : vector<1xf32>
    %322 = vector.multi_reduction <add>, %321, %cst_82 [1] : vector<1x128xf32> to vector<1xf32>
    %323 = vector.shape_cast %322 : vector<1xf32> to vector<1x1xf32>
    %324 = tpu.reciprocal %323 {approx = true} : vector<1x1xf32> -> vector<1x1xf32>
    %325 = vector.broadcast %324 : vector<1x1xf32> to vector<1x128xf32>
    %326 = arith.mulf %321, %325 : vector<1x128xf32>
    %327 = arith.index_cast %c5_i32 : i32 to index
    %c128_83 = arith.constant 128 : index
    %328 = vector.load %arg5[%327, %c128_83] : memref<8x384xf32, #tpu.memory_space<vmem>>, vector<1x128xf32>
    tpu.vector_store %arg5[%327, %c128_83], %326 {strides = array<i32>} : memref<8x384xf32, #tpu.memory_space<vmem>>, vector<1x128xf32>,
    %329 = arith.index_cast %c5_i32 : i32 to index
    %c128_84 = arith.constant 128 : index
    %330 = vector.load %arg6[%329, %c128_84] : memref<8x256xf32, #tpu.memory_space<vmem>>, vector<1x32xf32>
    %cst_85 = arith.constant dense<0.000000e+00> : vector<1x32xf32>
    %331 = tpu.matmul %326, %3, %cst_85 {dimension_numbers = #tpu.dot_dimension_numbers<[1], [0], [0], [1], [0, 0, 1, 1], [], []>} : vector<1x128xf32>, vector<128x32xf32>, vector<1x32xf32> -> vector<1x32xf32>
    %332 = arith.addf %330, %331 : vector<1x32xf32>
    %cst_86 = arith.constant 0.000000e+00 : f32
    %333 = vector.broadcast %cst_86 : f32 to vector<1x32xf32>
    %334 = arith.maximumf %332, %333 : vector<1x32xf32>
    %cst_87 = arith.constant dense<0.000000e+00> : vector<1x128xf32>
    %335 = tpu.matmul %334, %1, %cst_87 {dimension_numbers = #tpu.dot_dimension_numbers<[1], [0], [0], [1], [0, 0, 1, 1], [], []>} : vector<1x32xf32>, vector<32x128xf32>, vector<1x128xf32> -> vector<1x128xf32>
    %336 = vector.extract_strided_slice %335 {offsets = [0, 0], sizes = [1, 32], strides = [1, 1]} : vector<1x128xf32> to vector<1x32xf32>
    %337 = vector.extract_strided_slice %312 {offsets = [0, 128], sizes = [1, 32], strides = [1, 1]} : vector<1x256xf32> to vector<1x32xf32>
    %338 = arith.addf %336, %337 : vector<1x32xf32>
    %339 = vector.extract_strided_slice %2 {offsets = [0, 0], sizes = [1, 32], strides = [1, 1]} : vector<1x128xf32> to vector<1x32xf32>
    %340 = arith.addf %338, %339 : vector<1x32xf32>
    %341 = arith.negf %340 : vector<1x32xf32>
    %342 = math.exp %341 : vector<1x32xf32>
    %cst_88 = arith.constant 1.000000e+00 : f32
    %343 = vector.broadcast %cst_88 : f32 to vector<1x32xf32>
    %344 = arith.addf %343, %342 : vector<1x32xf32>
    %345 = arith.divf %343, %344 : vector<1x32xf32>
    %346 = vector.extract_strided_slice %335 {offsets = [0, 32], sizes = [1, 32], strides = [1, 1]} : vector<1x128xf32> to vector<1x32xf32>
    %347 = vector.extract_strided_slice %312 {offsets = [0, 160], sizes = [1, 32], strides = [1, 1]} : vector<1x256xf32> to vector<1x32xf32>
    %348 = arith.addf %346, %347 : vector<1x32xf32>
    %349 = vector.extract_strided_slice %2 {offsets = [0, 32], sizes = [1, 32], strides = [1, 1]} : vector<1x128xf32> to vector<1x32xf32>
    %350 = arith.addf %348, %349 : vector<1x32xf32>
    %351 = arith.negf %350 : vector<1x32xf32>
    %352 = math.exp %351 : vector<1x32xf32>
    %cst_89 = arith.constant 1.000000e+00 : f32
    %353 = vector.broadcast %cst_89 : f32 to vector<1x32xf32>
    %354 = arith.addf %353, %352 : vector<1x32xf32>
    %355 = arith.divf %353, %354 : vector<1x32xf32>
    %356 = vector.extract_strided_slice %335 {offsets = [0, 64], sizes = [1, 32], strides = [1, 1]} : vector<1x128xf32> to vector<1x32xf32>
    %357 = vector.extract_strided_slice %2 {offsets = [0, 64], sizes = [1, 32], strides = [1, 1]} : vector<1x128xf32> to vector<1x32xf32>
    %358 = arith.addf %356, %357 : vector<1x32xf32>
    %359 = vector.extract_strided_slice %312 {offsets = [0, 192], sizes = [1, 32], strides = [1, 1]} : vector<1x256xf32> to vector<1x32xf32>
    %360 = vector.extract_strided_slice %2 {offsets = [0, 96], sizes = [1, 32], strides = [1, 1]} : vector<1x128xf32> to vector<1x32xf32>
    %361 = arith.addf %359, %360 : vector<1x32xf32>
    %362 = arith.mulf %345, %361 : vector<1x32xf32>
    %363 = arith.addf %358, %362 : vector<1x32xf32>
    %364 = math.tanh %363 : vector<1x32xf32>
    %cst_90 = arith.constant 1.000000e+00 : f32
    %365 = vector.broadcast %cst_90 : f32 to vector<1x32xf32>
    %366 = arith.subf %365, %355 : vector<1x32xf32>
    %367 = arith.mulf %366, %364 : vector<1x32xf32>
    %368 = arith.mulf %355, %309 : vector<1x32xf32>
    %369 = arith.addf %367, %368 : vector<1x32xf32>
    %370 = arith.index_cast %c5_i32 : i32 to index
    %c0_91 = arith.constant 0 : index
    %371 = vector.load %arg7[%370, %c0_91] : memref<8x32xf32, #tpu.memory_space<vmem>>, vector<1x32xf32>
    tpu.vector_store %arg7[%370, %c0_91], %369 {strides = array<i32>} : memref<8x32xf32, #tpu.memory_space<vmem>>, vector<1x32xf32>,
    %c6_i32 = arith.constant 6 : i32
    %cst_92 = arith.constant dense<0.000000e+00> : vector<1x256xf32>
    %372 = tpu.matmul %369, %0, %cst_92 {dimension_numbers = #tpu.dot_dimension_numbers<[1], [0], [0], [1], [0, 0, 1, 1], [], []>} : vector<1x32xf32>, vector<32x256xf32>, vector<1x256xf32> -> vector<1x256xf32>
    %373 = arith.index_cast %c6_i32 : i32 to index
    %c0_93 = arith.constant 0 : index
    %374 = vector.load %arg6[%373, %c0_93] : memref<8x256xf32, #tpu.memory_space<vmem>>, vector<1x128xf32>
    %375 = vector.extract_strided_slice %372 {offsets = [0, 0], sizes = [1, 128], strides = [1, 1]} : vector<1x256xf32> to vector<1x128xf32>
    %376 = arith.addf %374, %375 : vector<1x128xf32>
    %cst_94 = arith.constant dense<0xFF800000> : vector<1xf32>
    %377 = vector.multi_reduction <maximumf>, %376, %cst_94 [1] : vector<1x128xf32> to vector<1xf32>
    %378 = vector.shape_cast %377 : vector<1xf32> to vector<1x1xf32>
    %379 = vector.broadcast %378 : vector<1x1xf32> to vector<1x128xf32>
    %380 = arith.subf %376, %379 : vector<1x128xf32>
    %381 = math.exp %380 : vector<1x128xf32>
    %cst_95 = arith.constant dense<0.000000e+00> : vector<1xf32>
    %382 = vector.multi_reduction <add>, %381, %cst_95 [1] : vector<1x128xf32> to vector<1xf32>
    %383 = vector.shape_cast %382 : vector<1xf32> to vector<1x1xf32>
    %384 = tpu.reciprocal %383 {approx = true} : vector<1x1xf32> -> vector<1x1xf32>
    %385 = vector.broadcast %384 : vector<1x1xf32> to vector<1x128xf32>
    %386 = arith.mulf %381, %385 : vector<1x128xf32>
    %387 = arith.index_cast %c6_i32 : i32 to index
    %c128_96 = arith.constant 128 : index
    %388 = vector.load %arg5[%387, %c128_96] : memref<8x384xf32, #tpu.memory_space<vmem>>, vector<1x128xf32>
    tpu.vector_store %arg5[%387, %c128_96], %386 {strides = array<i32>} : memref<8x384xf32, #tpu.memory_space<vmem>>, vector<1x128xf32>,
    %389 = arith.index_cast %c6_i32 : i32 to index
    %c128_97 = arith.constant 128 : index
    %390 = vector.load %arg6[%389, %c128_97] : memref<8x256xf32, #tpu.memory_space<vmem>>, vector<1x32xf32>
    %cst_98 = arith.constant dense<0.000000e+00> : vector<1x32xf32>
    %391 = tpu.matmul %386, %3, %cst_98 {dimension_numbers = #tpu.dot_dimension_numbers<[1], [0], [0], [1], [0, 0, 1, 1], [], []>} : vector<1x128xf32>, vector<128x32xf32>, vector<1x32xf32> -> vector<1x32xf32>
    %392 = arith.addf %390, %391 : vector<1x32xf32>
    %cst_99 = arith.constant 0.000000e+00 : f32
    %393 = vector.broadcast %cst_99 : f32 to vector<1x32xf32>
    %394 = arith.maximumf %392, %393 : vector<1x32xf32>
    %cst_100 = arith.constant dense<0.000000e+00> : vector<1x128xf32>
    %395 = tpu.matmul %394, %1, %cst_100 {dimension_numbers = #tpu.dot_dimension_numbers<[1], [0], [0], [1], [0, 0, 1, 1], [], []>} : vector<1x32xf32>, vector<32x128xf32>, vector<1x128xf32> -> vector<1x128xf32>
    %396 = vector.extract_strided_slice %395 {offsets = [0, 0], sizes = [1, 32], strides = [1, 1]} : vector<1x128xf32> to vector<1x32xf32>
    %397 = vector.extract_strided_slice %372 {offsets = [0, 128], sizes = [1, 32], strides = [1, 1]} : vector<1x256xf32> to vector<1x32xf32>
    %398 = arith.addf %396, %397 : vector<1x32xf32>
    %399 = vector.extract_strided_slice %2 {offsets = [0, 0], sizes = [1, 32], strides = [1, 1]} : vector<1x128xf32> to vector<1x32xf32>
    %400 = arith.addf %398, %399 : vector<1x32xf32>
    %401 = arith.negf %400 : vector<1x32xf32>
    %402 = math.exp %401 : vector<1x32xf32>
    %cst_101 = arith.constant 1.000000e+00 : f32
    %403 = vector.broadcast %cst_101 : f32 to vector<1x32xf32>
    %404 = arith.addf %403, %402 : vector<1x32xf32>
    %405 = arith.divf %403, %404 : vector<1x32xf32>
    %406 = vector.extract_strided_slice %395 {offsets = [0, 32], sizes = [1, 32], strides = [1, 1]} : vector<1x128xf32> to vector<1x32xf32>
    %407 = vector.extract_strided_slice %372 {offsets = [0, 160], sizes = [1, 32], strides = [1, 1]} : vector<1x256xf32> to vector<1x32xf32>
    %408 = arith.addf %406, %407 : vector<1x32xf32>
    %409 = vector.extract_strided_slice %2 {offsets = [0, 32], sizes = [1, 32], strides = [1, 1]} : vector<1x128xf32> to vector<1x32xf32>
    %410 = arith.addf %408, %409 : vector<1x32xf32>
    %411 = arith.negf %410 : vector<1x32xf32>
    %412 = math.exp %411 : vector<1x32xf32>
    %cst_102 = arith.constant 1.000000e+00 : f32
    %413 = vector.broadcast %cst_102 : f32 to vector<1x32xf32>
    %414 = arith.addf %413, %412 : vector<1x32xf32>
    %415 = arith.divf %413, %414 : vector<1x32xf32>
    %416 = vector.extract_strided_slice %395 {offsets = [0, 64], sizes = [1, 32], strides = [1, 1]} : vector<1x128xf32> to vector<1x32xf32>
    %417 = vector.extract_strided_slice %2 {offsets = [0, 64], sizes = [1, 32], strides = [1, 1]} : vector<1x128xf32> to vector<1x32xf32>
    %418 = arith.addf %416, %417 : vector<1x32xf32>
    %419 = vector.extract_strided_slice %372 {offsets = [0, 192], sizes = [1, 32], strides = [1, 1]} : vector<1x256xf32> to vector<1x32xf32>
    %420 = vector.extract_strided_slice %2 {offsets = [0, 96], sizes = [1, 32], strides = [1, 1]} : vector<1x128xf32> to vector<1x32xf32>
    %421 = arith.addf %419, %420 : vector<1x32xf32>
    %422 = arith.mulf %405, %421 : vector<1x32xf32>
    %423 = arith.addf %418, %422 : vector<1x32xf32>
    %424 = math.tanh %423 : vector<1x32xf32>
    %cst_103 = arith.constant 1.000000e+00 : f32
    %425 = vector.broadcast %cst_103 : f32 to vector<1x32xf32>
    %426 = arith.subf %425, %415 : vector<1x32xf32>
    %427 = arith.mulf %426, %424 : vector<1x32xf32>
    %428 = arith.mulf %415, %369 : vector<1x32xf32>
    %429 = arith.addf %427, %428 : vector<1x32xf32>
    %430 = arith.index_cast %c6_i32 : i32 to index
    %c0_104 = arith.constant 0 : index
    %431 = vector.load %arg7[%430, %c0_104] : memref<8x32xf32, #tpu.memory_space<vmem>>, vector<1x32xf32>
    tpu.vector_store %arg7[%430, %c0_104], %429 {strides = array<i32>} : memref<8x32xf32, #tpu.memory_space<vmem>>, vector<1x32xf32>,
    %c7_i32 = arith.constant 7 : i32
    %cst_105 = arith.constant dense<0.000000e+00> : vector<1x256xf32>
    %432 = tpu.matmul %429, %0, %cst_105 {dimension_numbers = #tpu.dot_dimension_numbers<[1], [0], [0], [1], [0, 0, 1, 1], [], []>} : vector<1x32xf32>, vector<32x256xf32>, vector<1x256xf32> -> vector<1x256xf32>
    %433 = arith.index_cast %c7_i32 : i32 to index
    %c0_106 = arith.constant 0 : index
    %434 = vector.load %arg6[%433, %c0_106] : memref<8x256xf32, #tpu.memory_space<vmem>>, vector<1x128xf32>
    %435 = vector.extract_strided_slice %432 {offsets = [0, 0], sizes = [1, 128], strides = [1, 1]} : vector<1x256xf32> to vector<1x128xf32>
    %436 = arith.addf %434, %435 : vector<1x128xf32>
    %cst_107 = arith.constant dense<0xFF800000> : vector<1xf32>
    %437 = vector.multi_reduction <maximumf>, %436, %cst_107 [1] : vector<1x128xf32> to vector<1xf32>
    %438 = vector.shape_cast %437 : vector<1xf32> to vector<1x1xf32>
    %439 = vector.broadcast %438 : vector<1x1xf32> to vector<1x128xf32>
    %440 = arith.subf %436, %439 : vector<1x128xf32>
    %441 = math.exp %440 : vector<1x128xf32>
    %cst_108 = arith.constant dense<0.000000e+00> : vector<1xf32>
    %442 = vector.multi_reduction <add>, %441, %cst_108 [1] : vector<1x128xf32> to vector<1xf32>
    %443 = vector.shape_cast %442 : vector<1xf32> to vector<1x1xf32>
    %444 = tpu.reciprocal %443 {approx = true} : vector<1x1xf32> -> vector<1x1xf32>
    %445 = vector.broadcast %444 : vector<1x1xf32> to vector<1x128xf32>
    %446 = arith.mulf %441, %445 : vector<1x128xf32>
    %447 = arith.index_cast %c7_i32 : i32 to index
    %c128_109 = arith.constant 128 : index
    %448 = vector.load %arg5[%447, %c128_109] : memref<8x384xf32, #tpu.memory_space<vmem>>, vector<1x128xf32>
    tpu.vector_store %arg5[%447, %c128_109], %446 {strides = array<i32>} : memref<8x384xf32, #tpu.memory_space<vmem>>, vector<1x128xf32>,
    %449 = arith.index_cast %c7_i32 : i32 to index
    %c128_110 = arith.constant 128 : index
    %450 = vector.load %arg6[%449, %c128_110] : memref<8x256xf32, #tpu.memory_space<vmem>>, vector<1x32xf32>
    %cst_111 = arith.constant dense<0.000000e+00> : vector<1x32xf32>
    %451 = tpu.matmul %446, %3, %cst_111 {dimension_numbers = #tpu.dot_dimension_numbers<[1], [0], [0], [1], [0, 0, 1, 1], [], []>} : vector<1x128xf32>, vector<128x32xf32>, vector<1x32xf32> -> vector<1x32xf32>
    %452 = arith.addf %450, %451 : vector<1x32xf32>
    %cst_112 = arith.constant 0.000000e+00 : f32
    %453 = vector.broadcast %cst_112 : f32 to vector<1x32xf32>
    %454 = arith.maximumf %452, %453 : vector<1x32xf32>
    %cst_113 = arith.constant dense<0.000000e+00> : vector<1x128xf32>
    %455 = tpu.matmul %454, %1, %cst_113 {dimension_numbers = #tpu.dot_dimension_numbers<[1], [0], [0], [1], [0, 0, 1, 1], [], []>} : vector<1x32xf32>, vector<32x128xf32>, vector<1x128xf32> -> vector<1x128xf32>
    %456 = vector.extract_strided_slice %455 {offsets = [0, 0], sizes = [1, 32], strides = [1, 1]} : vector<1x128xf32> to vector<1x32xf32>
    %457 = vector.extract_strided_slice %432 {offsets = [0, 128], sizes = [1, 32], strides = [1, 1]} : vector<1x256xf32> to vector<1x32xf32>
    %458 = arith.addf %456, %457 : vector<1x32xf32>
    %459 = vector.extract_strided_slice %2 {offsets = [0, 0], sizes = [1, 32], strides = [1, 1]} : vector<1x128xf32> to vector<1x32xf32>
    %460 = arith.addf %458, %459 : vector<1x32xf32>
    %461 = arith.negf %460 : vector<1x32xf32>
    %462 = math.exp %461 : vector<1x32xf32>
    %cst_114 = arith.constant 1.000000e+00 : f32
    %463 = vector.broadcast %cst_114 : f32 to vector<1x32xf32>
    %464 = arith.addf %463, %462 : vector<1x32xf32>
    %465 = arith.divf %463, %464 : vector<1x32xf32>
    %466 = vector.extract_strided_slice %455 {offsets = [0, 32], sizes = [1, 32], strides = [1, 1]} : vector<1x128xf32> to vector<1x32xf32>
    %467 = vector.extract_strided_slice %432 {offsets = [0, 160], sizes = [1, 32], strides = [1, 1]} : vector<1x256xf32> to vector<1x32xf32>
    %468 = arith.addf %466, %467 : vector<1x32xf32>
    %469 = vector.extract_strided_slice %2 {offsets = [0, 32], sizes = [1, 32], strides = [1, 1]} : vector<1x128xf32> to vector<1x32xf32>
    %470 = arith.addf %468, %469 : vector<1x32xf32>
    %471 = arith.negf %470 : vector<1x32xf32>
    %472 = math.exp %471 : vector<1x32xf32>
    %cst_115 = arith.constant 1.000000e+00 : f32
    %473 = vector.broadcast %cst_115 : f32 to vector<1x32xf32>
    %474 = arith.addf %473, %472 : vector<1x32xf32>
    %475 = arith.divf %473, %474 : vector<1x32xf32>
    %476 = vector.extract_strided_slice %455 {offsets = [0, 64], sizes = [1, 32], strides = [1, 1]} : vector<1x128xf32> to vector<1x32xf32>
    %477 = vector.extract_strided_slice %2 {offsets = [0, 64], sizes = [1, 32], strides = [1, 1]} : vector<1x128xf32> to vector<1x32xf32>
    %478 = arith.addf %476, %477 : vector<1x32xf32>
    %479 = vector.extract_strided_slice %432 {offsets = [0, 192], sizes = [1, 32], strides = [1, 1]} : vector<1x256xf32> to vector<1x32xf32>
    %480 = vector.extract_strided_slice %2 {offsets = [0, 96], sizes = [1, 32], strides = [1, 1]} : vector<1x128xf32> to vector<1x32xf32>
    %481 = arith.addf %479, %480 : vector<1x32xf32>
    %482 = arith.mulf %465, %481 : vector<1x32xf32>
    %483 = arith.addf %478, %482 : vector<1x32xf32>
    %484 = math.tanh %483 : vector<1x32xf32>
    %cst_116 = arith.constant 1.000000e+00 : f32
    %485 = vector.broadcast %cst_116 : f32 to vector<1x32xf32>
    %486 = arith.subf %485, %475 : vector<1x32xf32>
    %487 = arith.mulf %486, %484 : vector<1x32xf32>
    %488 = arith.mulf %475, %429 : vector<1x32xf32>
    %489 = arith.addf %487, %488 : vector<1x32xf32>
    %490 = arith.index_cast %c7_i32 : i32 to index
    %c0_117 = arith.constant 0 : index
    %491 = vector.load %arg7[%490, %c0_117] : memref<8x32xf32, #tpu.memory_space<vmem>>, vector<1x32xf32>
    tpu.vector_store %arg7[%490, %c0_117], %489 {strides = array<i32>} : memref<8x32xf32, #tpu.memory_space<vmem>>, vector<1x32xf32>,
    %c8_i32 = arith.constant 8 : i32
    %c0_118 = arith.constant 0 : index
    %c0_119 = arith.constant 0 : index
    %492 = vector.load %arg7[%c0_118, %c0_119] : memref<8x32xf32, #tpu.memory_space<vmem>>, vector<8x32xf32>
    %c0_120 = arith.constant 0 : index
    %c640 = arith.constant 640 : index
    %493 = vector.load %arg3[%c0_120, %c640] : memref<32x768xf32, #tpu.memory_space<vmem>>, vector<32x128xf32>
    %cst_121 = arith.constant dense<0.000000e+00> : vector<8x128xf32>
    %494 = tpu.matmul %492, %493, %cst_121 {dimension_numbers = #tpu.dot_dimension_numbers<[1], [0], [0], [1], [0, 0, 1, 1], [], []>} : vector<8x32xf32>, vector<32x128xf32>, vector<8x128xf32> -> vector<8x128xf32>
    %c0_122 = arith.constant 0 : index
    %c384 = arith.constant 384 : index
    %495 = vector.load %arg4[%c0_122, %c384] : memref<1x512xf32, #tpu.memory_space<vmem>>, vector<1x128xf32>
    %496 = vector.broadcast %495 : vector<1x128xf32> to vector<8x128xf32>
    %497 = arith.addf %494, %496 : vector<8x128xf32>
    %cst_123 = arith.constant dense<0xFF800000> : vector<8xf32>
    %498 = vector.multi_reduction <maximumf>, %497, %cst_123 [1] : vector<8x128xf32> to vector<8xf32>
    %499 = vector.shape_cast %498 : vector<8xf32> to vector<8x1xf32>
    %500 = vector.broadcast %499 : vector<8x1xf32> to vector<8x128xf32>
    %501 = arith.subf %497, %500 : vector<8x128xf32>
    %502 = math.exp %501 : vector<8x128xf32>
    %cst_124 = arith.constant dense<0.000000e+00> : vector<8xf32>
    %503 = vector.multi_reduction <add>, %502, %cst_124 [1] : vector<8x128xf32> to vector<8xf32>
    %504 = vector.shape_cast %503 : vector<8xf32> to vector<8x1xf32>
    %505 = math.log %504 : vector<8x1xf32>
    %506 = arith.addf %499, %505 : vector<8x1xf32>
    %507 = vector.broadcast %506 : vector<8x1xf32> to vector<8x128xf32>
    %508 = arith.subf %497, %507 : vector<8x128xf32>
    %c0_125 = arith.constant 0 : index
    %c0_126 = arith.constant 0 : index
    %509 = vector.load %arg5[%c0_125, %c0_126] : memref<8x384xf32, #tpu.memory_space<vmem>>, vector<8x128xf32>
    tpu.vector_store %arg5[%c0_125, %c0_126], %508 {strides = array<i32>} : memref<8x384xf32, #tpu.memory_space<vmem>>, vector<8x128xf32>,
    %cst_127 = arith.constant 0.000000e+00 : f32
    %510 = vector.broadcast %cst_127 : f32 to vector<8x96xf32>
    %511 = tpu.concatenate %492, %510 in 1 : vector<8x32xf32>, vector<8x96xf32> -> vector<8x128xf32>
    %c0_128 = arith.constant 0 : index
    %c256_129 = arith.constant 256 : index
    %512 = vector.load %arg5[%c0_128, %c256_129] : memref<8x384xf32, #tpu.memory_space<vmem>>, vector<8x128xf32>
    tpu.vector_store %arg5[%c0_128, %c256_129], %511 {strides = array<i32>} : memref<8x384xf32, #tpu.memory_space<vmem>>, vector<8x128xf32>,
    return
  }
}

</mosaic_0001>

<llo_original>
// kernel: attn_decoder_decode.1
$region0: #{attn_decoder_decode.1}
  #allocation0 [shape = 'u32[]', space=smem, size = 0x4, offset = 0x4, fixed_abs, tag = 'smem constant byte address 0x4 - core index']
  #allocation1 [shape = 'u32[72,128]{1,0:T(1,128)}', space=vmem, size = 0x9000, scoped, tag = 'internal scratch']
  #allocation2 [shape = 'f32[8,256]{1,0:T(8,128)}', space=vmem, size = 0x2000, scoped, tag = 'scratch operand']
  #allocation3 [shape = 'f32[8,32]{1,0:T(8,128)}', space=vmem, size = 0x1000, scoped, tag = 'scratch operand']
  %s0 = inlined_call_operand.vmem [shape: f32[8,32], index: 0, kind: input, shape index: {}]
  %s1 = inlined_call_operand.vmem [shape: f32[1,32], index: 1, kind: input, shape index: {}]
  %s2 = inlined_call_operand.vmem [shape: f32[128,32], index: 2, kind: input, shape index: {}]
  %s3 = inlined_call_operand.vmem [shape: f32[32,768], index: 3, kind: input, shape index: {}]
  %s4 = inlined_call_operand.vmem [shape: f32[1,512], index: 4, kind: input, shape index: {}]
  %s5 = inlined_call_operand.vmem [shape: f32[8,384], index: 5, kind: output, shape index: {}]
  %s6 = sld [smem:[#allocation0]]
  $region30: #{attn_decoder_decode.1} parent=0
    _
  %s8 = ssub.s32 1, %s6
  %s9 = scalar_select 0, %s8, %s6
  // Predicated region
  $region2: #{attn_decoder_decode.1} parent=0 // pred_check
    _
  $region3: #{attn_decoder_decode.1} parent=0 // pred_check_branch
    %11 = sbr.rel (0) target = $region5
  $region4: #{attn_decoder_decode.1} parent=0 // pred_region
    _
  $region5: #{attn_decoder_decode.1} parent=0 // pred_fallthru
    _
  // Predicated region
  $region6: #{attn_decoder_decode.1} parent=0 // pred_check
    _
  $region7: #{attn_decoder_decode.1} parent=0 // pred_check_branch
    %13 = sbr.rel (0) target = $region9
  $region8: #{attn_decoder_decode.1} parent=0 // pred_region
    _
  $region9: #{attn_decoder_decode.1} parent=0 // pred_fallthru
    _
  // Predicated region
  $region10: #{attn_decoder_decode.1} parent=0 // pred_check
    _
  $region11: #{attn_decoder_decode.1} parent=0 // pred_check_branch
    %15 = sbr.rel (0) target = $region13
  $region12: #{attn_decoder_decode.1} parent=0 // pred_region
    _
  $region13: #{attn_decoder_decode.1} parent=0 // pred_fallthru
    _
  // Predicated region
  $region14: #{attn_decoder_decode.1} parent=0 // pred_check
    _
  $region15: #{attn_decoder_decode.1} parent=0 // pred_check_branch
    %17 = sbr.rel (0) target = $region17
  $region16: #{attn_decoder_decode.1} parent=0 // pred_region
    _
  $region17: #{attn_decoder_decode.1} parent=0 // pred_fallthru
    _
  // Predicated region
  $region18: #{attn_decoder_decode.1} parent=0 // pred_check
    _
  $region19: #{attn_decoder_decode.1} parent=0 // pred_check_branch
    %19 = sbr.rel (0) target = $region21
  $region20: #{attn_decoder_decode.1} parent=0 // pred_region
    _
  $region21: #{attn_decoder_decode.1} parent=0 // pred_fallthru
    _
  %v20 = vld [vmem:[%s3 + $0x10] sm:$0xff]
  %v21 = vld [vmem:[%s3 + $0x18] sm:$0xff]
  %v22 = vld [vmem:[%s3 + $0x40] sm:$0xff]
  %v23 = vld [vmem:[%s3 + $0x48] sm:$0xff]
  %v24 = vld [vmem:[%s3 + $0x70] sm:$0xff]
  %v25 = vld [vmem:[%s3 + $0x78] sm:$0xff]
  %v26 = vld [vmem:[%s3 + $0xa0] sm:$0xff]
  %v27 = vld [vmem:[%s3 + $0xa8] sm:$0xff]
  %v28 = vld [vmem:[%s3 + $0x20] sm:$0xff]
  %v29 = vld [vmem:[%s3 + $0x50] sm:$0xff]
  %v30 = vld [vmem:[%s3 + $0x80] sm:$0xff]
  %v31 = vld [vmem:[%s3 + $0xb0] sm:$0xff]
  %v32 = vld [vmem:[%s4 + $0x2] sm:$0x1]
  %v33 = vld [vmem:[%s2] sm:$0xff]
  %v34 = vld [vmem:[%s2 + $0x8] sm:$0xff]
  %v35 = vld [vmem:[%s2 + $0x10] sm:$0xff]
  %v36 = vld [vmem:[%s2 + $0x18] sm:$0xff]
  %v37 = vld [vmem:[%s2 + $0x20] sm:$0xff]
  %v38 = vld [vmem:[%s2 + $0x28] sm:$0xff]
  %v39 = vld [vmem:[%s2 + $0x30] sm:$0xff]
  %v40 = vld [vmem:[%s2 + $0x38] sm:$0xff]
  %v41 = vld [vmem:[%s2 + $0x40] sm:$0xff]
  %v42 = vld [vmem:[%s2 + $0x48] sm:$0xff]
  %v43 = vld [vmem:[%s2 + $0x50] sm:$0xff]
  %v44 = vld [vmem:[%s2 + $0x58] sm:$0xff]
  %v45 = vld [vmem:[%s2 + $0x60] sm:$0xff]
  %v46 = vld [vmem:[%s2 + $0x68] sm:$0xff]
  %v47 = vld [vmem:[%s2 + $0x70] sm:$0xff]
  %v48 = vld [vmem:[%s2 + $0x78] sm:$0xff]
  %v49 = vld [vmem:[%s0] sm:$0xff]
  %v50 = vld [vmem:[%s3] sm:$0xff]
  %v51 = vld [vmem:[%s3 + $0x8] sm:$0xff]
  %v52 = vld [vmem:[%s3 + $0x30] sm:$0xff]
  %v53 = vld [vmem:[%s3 + $0x38] sm:$0xff]
  %v54 = vld [vmem:[%s3 + $0x60] sm:$0xff]
  %v55 = vld [vmem:[%s3 + $0x68] sm:$0xff]
  %v56 = vld [vmem:[%s3 + $0x90] sm:$0xff]
  %v57 = vld [vmem:[%s3 + $0x98] sm:$0xff]
  %v58 = vld [vmem:[%s4] sm:$0x3]
  %v60 = vperm.slane %v58, 0
  %v61 = vperm.slane %v58, 1
  %vm64 = vcmask 261120
  %v66 = vsel %vm64, %v49, 0
  %68 = vmatpush.msra.mxu0 0.0
  %69 = vmatpush.msra.mxu0 0.0
  %70 = vmatpush.msra.mxu0 0.0
  %71 = vmatpush.msra.mxu0 0.0
  %72 = vmatpush.msra.mxu0 0.0
  %73 = vmatpush.msra.mxu0 0.0
  %74 = vmatpush.msra.mxu0 0.0
  %75 = vmatpush.msra.mxu0 0.0
  %76 = vmatpush.msra.mxu0 0.0
  %77 = vmatpush.msra.mxu0 0.0
  %78 = vmatpush.msra.mxu0 0.0
  %79 = vmatpush.msra.mxu0 0.0
  %80 = vmatpush.msra.mxu0 %v56
  %81 = vmatpush.msra.mxu0 %v54
  %82 = vmatpush.msra.mxu0 %v52
  %83 = vmatpush.msra.mxu0 %v50
  %84 = vmatmul.f32.gmra.mxu0 %v66
  %v85 = vpop.f32.mrf.mxu0
  %v86 = vadd.f32 %v60, %v85
  %87 = vdwg.mxu0
  %88 = vmatpush.msra.mxu0 0.0
  %89 = vmatpush.msra.mxu0 0.0
  %90 = vmatpush.msra.mxu0 0.0
  %91 = vmatpush.msra.mxu0 0.0
  %92 = vmatpush.msra.mxu0 0.0
  %93 = vmatpush.msra.mxu0 0.0
  %94 = vmatpush.msra.mxu0 0.0
  %95 = vmatpush.msra.mxu0 0.0
  %96 = vmatpush.msra.mxu0 0.0
  %97 = vmatpush.msra.mxu0 0.0
  %98 = vmatpush.msra.mxu0 0.0
  %99 = vmatpush.msra.mxu0 0.0
  %100 = vmatpush.msra.mxu0 %v57
  %101 = vmatpush.msra.mxu0 %v55
  %102 = vmatpush.msra.mxu0 %v53
  %103 = vmatpush.msra.mxu0 %v51
  %104 = vmatmul.f32.gmra.mxu0 %v66
  %v105 = vpop.f32.mrf.mxu0
  %v106 = vadd.f32 %v61, %v105
  %107 = vdwg.mxu0
  %108 = vst [vmem:[#allocation2] sm:$0xff] %v86
  %109 = vst [vmem:[#allocation2 + $0x8] sm:$0xff] %v106
  %v110 = vld [vmem:[%s1] sm:$0x1]
  %v112 = vsel %vm64, %v110, 0
  %114 = vmatpush.msra.mxu0 0.0
  %115 = vmatpush.msra.mxu0 0.0
  %116 = vmatpush.msra.mxu0 0.0
  %117 = vmatpush.msra.mxu0 0.0
  %118 = vmatpush.msra.mxu0 0.0
  %119 = vmatpush.msra.mxu0 0.0
  %120 = vmatpush.msra.mxu0 0.0
  %121 = vmatpush.msra.mxu0 0.0
  %122 = vmatpush.msra.mxu0 0.0
  %123 = vmatpush.msra.mxu0 0.0
  %124 = vmatpush.msra.mxu0 0.0
  %125 = vmatpush.msra.mxu0 0.0
  %126 = vmatpush.msra.mxu0 %v26
  %127 = vmatpush.msra.mxu0 %v24
  %128 = vmatpush.msra.mxu0 %v22
  %129 = vmatpush.msra.mxu0 %v20
  %130 = vmatmul.f32.gmra.mxu0 %v112
  %v131 = vpop.f32.mrf.mxu0
  %v132 = vadd.f32 0.0, %v131
  %133 = vdwg.mxu0
  %134 = vmatpush.msra.mxu0 0.0
  %135 = vmatpush.msra.mxu0 0.0
  %136 = vmatpush.msra.mxu0 0.0
  %137 = vmatpush.msra.mxu0 0.0
  %138 = vmatpush.msra.mxu0 0.0
  %139 = vmatpush.msra.mxu0 0.0
  %140 = vmatpush.msra.mxu0 0.0
  %141 = vmatpush.msra.mxu0 0.0
  %142 = vmatpush.msra.mxu0 0.0
  %143 = vmatpush.msra.mxu0 0.0
  %144 = vmatpush.msra.mxu0 0.0
  %145 = vmatpush.msra.mxu0 0.0
  %146 = vmatpush.msra.mxu0 %v27
  %147 = vmatpush.msra.mxu0 %v25
  %148 = vmatpush.msra.mxu0 %v23
  %149 = vmatpush.msra.mxu0 %v21
  %150 = vmatmul.f32.gmra.mxu0 %v112
  %v151 = vpop.f32.mrf.mxu0
  %v152 = vadd.f32 0.0, %v151
  %153 = vdwg.mxu0
  %v154 = vld [vmem:[#allocation2] ss:$0 sm:$0xff]
  %v155 = vadd.f32 %v154, %v132
  %vm156 = vcmask 1040384
  %v157 = vsel %vm156, %v155, -inf
  %158 = vmax.xlane.f32.xlu0 %v157
  %v159 = vpop.xlane.xlu0 %158
  %v160 = vsub.f32 %v155, %v159
  %v161 = vmul.f32 %v160, 1.442695
  %v162 = vpow.pop %v161
  %v163 = vsel %vm156, %v162, 0.0
  %164 = vadd.xlane.f32.xlu0 %v163
  %v165 = vpop.xlane.xlu0 %164
  %v166 = vrcp.pop %v165
  %v167 = vmul.f32 %v162, %v166
  %168 = vst [vmem:[%s5 + $0x8] sm:$0x1] %v167
  %v169 = vld [vmem:[#allocation2 + $0x8] ss:$0 sm:$0xff]
  %170 = vmatpush.msra.mxu0 %v48
  %171 = vmatpush.msra.mxu0 %v47
  %172 = vmatpush.msra.mxu0 %v46
  %173 = vmatpush.msra.mxu0 %v45
  %174 = vmatpush.msra.mxu0 %v44
  %175 = vmatpush.msra.mxu0 %v43
  %176 = vmatpush.msra.mxu0 %v42
  %177 = vmatpush.msra.mxu0 %v41
  %178 = vmatpush.msra.mxu0 %v40
  %179 = vmatpush.msra.mxu0 %v39
  %180 = vmatpush.msra.mxu0 %v38
  %181 = vmatpush.msra.mxu0 %v37
  %182 = vmatpush.msra.mxu0 %v36
  %183 = vmatpush.msra.mxu0 %v35
  %184 = vmatpush.msra.mxu0 %v34
  %185 = vmatpush.msra.mxu0 %v33
  %186 = vmatmul.f32.gmra.mxu0 %v167
  %v187 = vpop.f32.mrf.mxu0
  %v188 = vadd.f32 0.0, %v187
  %189 = vdwg.mxu0
  %v190 = vadd.f32 %v169, %v188
  %v191 = vmax.f32 %v190, 0.0
  %v193 = vsel %vm64, %v191, 0
  %195 = vmatpush.msra.mxu0 0.0
  %196 = vmatpush.msra.mxu0 0.0
  %197 = vmatpush.msra.mxu0 0.0
  %198 = vmatpush.msra.mxu0 0.0
  %199 = vmatpush.msra.mxu0 0.0
  %200 = vmatpush.msra.mxu0 0.0
  %201 = vmatpush.msra.mxu0 0.0
  %202 = vmatpush.msra.mxu0 0.0
  %203 = vmatpush.msra.mxu0 0.0
  %204 = vmatpush.msra.mxu0 0.0
  %205 = vmatpush.msra.mxu0 0.0
  %206 = vmatpush.msra.mxu0 0.0
  %207 = vmatpush.msra.mxu0 %v31
  %208 = vmatpush.msra.mxu0 %v30
  %209 = vmatpush.msra.mxu0 %v29
  %210 = vmatpush.msra.mxu0 %v28
  %211 = vmatmul.f32.gmra.mxu0 %v193
  %v212 = vpop.f32.mrf.mxu0
  %v213 = vadd.f32 0.0, %v212
  %214 = vdwg.mxu0
  %v215 = vadd.f32 %v213, %v152
  %v216 = vadd.f32 %v215, %v32
  %v217 = vxor.u32 %v216, 2147483648
  %v218 = vmul.f32 %v217, 1.442695
  %v219 = vpow.pop %v218
  %v220 = vadd.f32 %v219, 1.0
  %v221 = vrcp.pop %v220
  %v222 = vmul.f32 %v220, %v221
  %v223 = vsub.f32 1.0, %v222
  %v224 = vmul.f32 %v221, %v223
  %v225 = vadd.f32 %v221, %v224
  %vm226 = vweird.f32 %v220
  %vm227 = vweird.f32 %v221
  %vm228 = vmor %vm226, %vm227
  %v229 = vsel %vm228, %v221, %v225
  %v230 = vand.u32 2147483647, %v220
  %vm231 = vcmp.eq.f32.partialorder %v230, 8.507059e+37
  %v232 = vand.u32 %v220, 2147483648
  %v233 = vor.u32 1.1754944e-38, %v232
  %v234 = vsel %vm231, %v233, %v229
  %v235 = vmul.f32 1.0, %v234
  %v236 = vadd.f32 %v213, %v32
  %v238 = vperm.slane %v32, 0
  %239 = vrot.lane.b32.xlu0 %v238, 96
  %v240 = vpop.permute.xlu0 %239
  %v242 = vadd.f32 %v152, %v240
  %244 = vrot.lane.b32.xlu0 %v242, 64
  %v245 = vpop.permute.xlu0 %244
  %v247 = vmul.f32 %v235, %v245
  %249 = vrot.lane.b32.xlu0 %v247, 64
  %v250 = vpop.permute.xlu0 %249
  %v252 = vadd.f32 %v236, %v250
  %v253 = vtanh.pop %v252
  %v254 = vsub.f32 1.0, %v235
  %256 = vrot.lane.b32.xlu0 %v253, 96
  %v257 = vpop.permute.xlu0 %256
  %v259 = vmul.f32 %v254, %v257
  %v260 = vperm.slane %v110, 0
  %261 = vrot.lane.b32.xlu0 %v260, 32
  %v262 = vpop.permute.xlu0 %261
  %v264 = vmul.f32 %v235, %v262
  %v265 = vadd.f32 %v259, %v264
  %267 = vrot.lane.b32.xlu0 %v265, 96
  %v268 = vpop.permute.xlu0 %267
  %vm270 = vcmask 253952
  %271 = vst.msk [vmem:[#allocation3] sm:$0x1] %vm270, %v268
  %v272 = vsel %vm64, %v268, 0
  %274 = vmatpush.msra.mxu0 0.0
  %275 = vmatpush.msra.mxu0 0.0
  %276 = vmatpush.msra.mxu0 0.0
  %277 = vmatpush.msra.mxu0 0.0
  %278 = vmatpush.msra.mxu0 0.0
  %279 = vmatpush.msra.mxu0 0.0
  %280 = vmatpush.msra.mxu0 0.0
  %281 = vmatpush.msra.mxu0 0.0
  %282 = vmatpush.msra.mxu0 0.0
  %283 = vmatpush.msra.mxu0 0.0
  %284 = vmatpush.msra.mxu0 0.0
  %285 = vmatpush.msra.mxu0 0.0
  %286 = vmatpush.msra.mxu0 %v26
  %287 = vmatpush.msra.mxu0 %v24
  %288 = vmatpush.msra.mxu0 %v22
  %289 = vmatpush.msra.mxu0 %v20
  %290 = vmatmul.f32.gmra.mxu0 %v272
  %v291 = vpop.f32.mrf.mxu0
  %v292 = vadd.f32 0.0, %v291
  %293 = vdwg.mxu0
  %294 = vmatpush.msra.mxu0 0.0
  %295 = vmatpush.msra.mxu0 0.0
  %296 = vmatpush.msra.mxu0 0.0
  %297 = vmatpush.msra.mxu0 0.0
  %298 = vmatpush.msra.mxu0 0.0
  %299 = vmatpush.msra.mxu0 0.0
  %300 = vmatpush.msra.mxu0 0.0
  %301 = vmatpush.msra.mxu0 0.0
  %302 = vmatpush.msra.mxu0 0.0
  %303 = vmatpush.msra.mxu0 0.0
  %304 = vmatpush.msra.mxu0 0.0
  %305 = vmatpush.msra.mxu0 0.0
  %306 = vmatpush.msra.mxu0 %v27
  %307 = vmatpush.msra.mxu0 %v25
  %308 = vmatpush.msra.mxu0 %v23
  %309 = vmatpush.msra.mxu0 %v21
  %310 = vmatmul.f32.gmra.mxu0 %v272
  %v311 = vpop.f32.mrf.mxu0
  %v312 = vadd.f32 0.0, %v311
  %313 = vdwg.mxu0
  %v314 = vld [vmem:[#allocation2 + $0x1] ss:$0 sm:$0xff]
  %v315 = vadd.f32 %v314, %v292
  %v316 = vsel %vm156, %v315, -inf
  %317 = vmax.xlane.f32.xlu0 %v316
  %v318 = vpop.xlane.xlu0 %317
  %v319 = vsub.f32 %v315, %v318
  %v320 = vmul.f32 %v319, 1.442695
  %v321 = vpow.pop %v320
  %v322 = vsel %vm156, %v321, 0.0
  %323 = vadd.xlane.f32.xlu0 %v322
  %v324 = vpop.xlane.xlu0 %323
  %v325 = vrcp.pop %v324
  %v326 = vmul.f32 %v321, %v325
  %327 = vst [vmem:[%s5 + $0x9] sm:$0x1] %v326
  %v328 = vld [vmem:[#allocation2 + $0x9] ss:$0 sm:$0xff]
  %329 = vmatpush.msra.mxu0 %v48
  %330 = vmatpush.msra.mxu0 %v47
  %331 = vmatpush.msra.mxu0 %v46
  %332 = vmatpush.msra.mxu0 %v45
  %333 = vmatpush.msra.mxu0 %v44
  %334 = vmatpush.msra.mxu0 %v43
  %335 = vmatpush.msra.mxu0 %v42
  %336 = vmatpush.msra.mxu0 %v41
  %337 = vmatpush.msra.mxu0 %v40
  %338 = vmatpush.msra.mxu0 %v39
  %339 = vmatpush.msra.mxu0 %v38
  %340 = vmatpush.msra.mxu0 %v37
  %341 = vmatpush.msra.mxu0 %v36
  %342 = vmatpush.msra.mxu0 %v35
  %343 = vmatpush.msra.mxu0 %v34
  %344 = vmatpush.msra.mxu0 %v33
  %345 = vmatmul.f32.gmra.mxu0 %v326
  %v346 = vpop.f32.mrf.mxu0
  %v347 = vadd.f32 0.0, %v346
  %348 = vdwg.mxu0
  %v349 = vadd.f32 %v328, %v347
  %v350 = vmax.f32 %v349, 0.0
  %v352 = vsel %vm64, %v350, 0
  %354 = vmatpush.msra.mxu0 0.0
  %355 = vmatpush.msra.mxu0 0.0
  %356 = vmatpush.msra.mxu0 0.0
  %357 = vmatpush.msra.mxu0 0.0
  %358 = vmatpush.msra.mxu0 0.0
  %359 = vmatpush.msra.mxu0 0.0
  %360 = vmatpush.msra.mxu0 0.0
  %361 = vmatpush.msra.mxu0 0.0
  %362 = vmatpush.msra.mxu0 0.0
  %363 = vmatpush.msra.mxu0 0.0
  %364 = vmatpush.msra.mxu0 0.0
  %365 = vmatpush.msra.mxu0 0.0
  %366 = vmatpush.msra.mxu0 %v31
  %367 = vmatpush.msra.mxu0 %v30
  %368 = vmatpush.msra.mxu0 %v29
  %369 = vmatpush.msra.mxu0 %v28
  %370 = vmatmul.f32.gmra.mxu0 %v352
  %v371 = vpop.f32.mrf.mxu0
  %v372 = vadd.f32 0.0, %v371
  %373 = vdwg.mxu0
  %v374 = vadd.f32 %v372, %v312
  %v375 = vadd.f32 %v374, %v32
  %v376 = vxor.u32 %v375, 2147483648
  %v377 = vmul.f32 %v376, 1.442695
  %v378 = vpow.pop %v377
  %v379 = vadd.f32 %v378, 1.0
  %v380 = vrcp.pop %v379
  %v381 = vmul.f32 %v379, %v380
  %v382 = vsub.f32 1.0, %v381
  %v383 = vmul.f32 %v380, %v382
  %v384 = vadd.f32 %v380, %v383
  %vm385 = vweird.f32 %v379
  %vm386 = vweird.f32 %v380
  %vm387 = vmor %vm385, %vm386
  %v388 = vsel %vm387, %v380, %v384
  %v389 = vand.u32 2147483647, %v379
  %vm390 = vcmp.eq.f32.partialorder %v389, 8.507059e+37
  %v391 = vand.u32 %v379, 2147483648
  %v392 = vor.u32 1.1754944e-38, %v391
  %v393 = vsel %vm390, %v392, %v388
  %v394 = vmul.f32 1.0, %v393
  %v395 = vadd.f32 %v372, %v32
  %v396 = vadd.f32 %v312, %v240
  %398 = vrot.lane.b32.xlu0 %v396, 64
  %v399 = vpop.permute.xlu0 %398
  %v401 = vmul.f32 %v394, %v399
  %403 = vrot.lane.b32.xlu0 %v401, 64
  %v404 = vpop.permute.xlu0 %403
  %v406 = vadd.f32 %v395, %v404
  %v407 = vtanh.pop %v406
  %v408 = vsub.f32 1.0, %v394
  %410 = vrot.lane.b32.xlu0 %v407, 96
  %v411 = vpop.permute.xlu0 %410
  %v413 = vmul.f32 %v408, %v411
  %v414 = vmul.f32 %v394, %v265
  %v415 = vadd.f32 %v413, %v414
  %417 = vrot.lane.b32.xlu0 %v415, 96
  %v418 = vpop.permute.xlu0 %417
  %420 = vst.msk [vmem:[#allocation3 + $0x1] sm:$0x1] %vm270, %v418
  %v421 = vsel %vm64, %v418, 0
  %423 = vmatpush.msra.mxu0 0.0
  %424 = vmatpush.msra.mxu0 0.0
  %425 = vmatpush.msra.mxu0 0.0
  %426 = vmatpush.msra.mxu0 0.0
  %427 = vmatpush.msra.mxu0 0.0
  %428 = vmatpush.msra.mxu0 0.0
  %429 = vmatpush.msra.mxu0 0.0
  %430 = vmatpush.msra.mxu0 0.0
  %431 = vmatpush.msra.mxu0 0.0
  %432 = vmatpush.msra.mxu0 0.0
  %433 = vmatpush.msra.mxu0 0.0
  %434 = vmatpush.msra.mxu0 0.0
  %435 = vmatpush.msra.mxu0 %v26
  %436 = vmatpush.msra.mxu0 %v24
  %437 = vmatpush.msra.mxu0 %v22
  %438 = vmatpush.msra.mxu0 %v20
  %439 = vmatmul.f32.gmra.mxu0 %v421
  %v440 = vpop.f32.mrf.mxu0
  %v441 = vadd.f32 0.0, %v440
  %442 = vdwg.mxu0
  %443 = vmatpush.msra.mxu0 0.0
  %444 = vmatpush.msra.mxu0 0.0
  %445 = vmatpush.msra.mxu0 0.0
  %446 = vmatpush.msra.mxu0 0.0
  %447 = vmatpush.msra.mxu0 0.0
  %448 = vmatpush.msra.mxu0 0.0
  %449 = vmatpush.msra.mxu0 0.0
  %450 = vmatpush.msra.mxu0 0.0
  %451 = vmatpush.msra.mxu0 0.0
  %452 = vmatpush.msra.mxu0 0.0
  %453 = vmatpush.msra.mxu0 0.0
  %454 = vmatpush.msra.mxu0 0.0
  %455 = vmatpush.msra.mxu0 %v27
  %456 = vmatpush.msra.mxu0 %v25
  %457 = vmatpush.msra.mxu0 %v23
  %458 = vmatpush.msra.mxu0 %v21
  %459 = vmatmul.f32.gmra.mxu0 %v421
  %v460 = vpop.f32.mrf.mxu0
  %v461 = vadd.f32 0.0, %v460
  %462 = vdwg.mxu0
  %v463 = vld [vmem:[#allocation2 + $0x2] ss:$0 sm:$0xff]
  %v464 = vadd.f32 %v463, %v441
  %v465 = vsel %vm156, %v464, -inf
  %466 = vmax.xlane.f32.xlu0 %v465
  %v467 = vpop.xlane.xlu0 %466
  %v468 = vsub.f32 %v464, %v467
  %v469 = vmul.f32 %v468, 1.442695
  %v470 = vpow.pop %v469
  %v471 = vsel %vm156, %v470, 0.0
  %472 = vadd.xlane.f32.xlu0 %v471
  %v473 = vpop.xlane.xlu0 %472
  %v474 = vrcp.pop %v473
  %v475 = vmul.f32 %v470, %v474
  %476 = vst [vmem:[%s5 + $0xa] sm:$0x1] %v475
  %v477 = vld [vmem:[#allocation2 + $0xa] ss:$0 sm:$0xff]
  %478 = vmatpush.msra.mxu0 %v48
  %479 = vmatpush.msra.mxu0 %v47
  %480 = vmatpush.msra.mxu0 %v46
  %481 = vmatpush.msra.mxu0 %v45
  %482 = vmatpush.msra.mxu0 %v44
  %483 = vmatpush.msra.mxu0 %v43
  %484 = vmatpush.msra.mxu0 %v42
  %485 = vmatpush.msra.mxu0 %v41
  %486 = vmatpush.msra.mxu0 %v40
  %487 = vmatpush.msra.mxu0 %v39
  %488 = vmatpush.msra.mxu0 %v38
  %489 = vmatpush.msra.mxu0 %v37
  %490 = vmatpush.msra.mxu0 %v36
  %491 = vmatpush.msra.mxu0 %v35
  %492 = vmatpush.msra.mxu0 %v34
  %493 = vmatpush.msra.mxu0 %v33
  %494 = vmatmul.f32.gmra.mxu0 %v475
  %v495 = vpop.f32.mrf.mxu0
  %v496 = vadd.f32 0.0, %v495
  %497 = vdwg.mxu0
  %v498 = vadd.f32 %v477, %v496
  %v499 = vmax.f32 %v498, 0.0
  %v501 = vsel %vm64, %v499, 0
  %503 = vmatpush.msra.mxu0 0.0
  %504 = vmatpush.msra.mxu0 0.0
  %505 = vmatpush.msra.mxu0 0.0
  %506 = vmatpush.msra.mxu0 0.0
  %507 = vmatpush.msra.mxu0 0.0
  %508 = vmatpush.msra.mxu0 0.0
  %509 = vmatpush.msra.mxu0 0.0
  %510 = vmatpush.msra.mxu0 0.0
  %511 = vmatpush.msra.mxu0 0.0
  %512 = vmatpush.msra.mxu0 0.0
  %513 = vmatpush.msra.mxu0 0.0
  %514 = vmatpush.msra.mxu0 0.0
  %515 = vmatpush.msra.mxu0 %v31
  %516 = vmatpush.msra.mxu0 %v30
  %517 = vmatpush.msra.mxu0 %v29
  %518 = vmatpush.msra.mxu0 %v28
  %519 = vmatmul.f32.gmra.mxu0 %v501
  %v520 = vpop.f32.mrf.mxu0
  %v521 = vadd.f32 0.0, %v520
  %522 = vdwg.mxu0
  %v523 = vadd.f32 %v521, %v461
  %v524 = vadd.f32 %v523, %v32
  %v525 = vxor.u32 %v524, 2147483648
  %v526 = vmul.f32 %v525, 1.442695
  %v527 = vpow.pop %v526
  %v528 = vadd.f32 %v527, 1.0
  %v529 = vrcp.pop %v528
  %v530 = vmul.f32 %v528, %v529
  %v531 = vsub.f32 1.0, %v530
  %v532 = vmul.f32 %v529, %v531
  %v533 = vadd.f32 %v529, %v532
  %vm534 = vweird.f32 %v528
  %vm535 = vweird.f32 %v529
  %vm536 = vmor %vm534, %vm535
  %v537 = vsel %vm536, %v529, %v533
  %v538 = vand.u32 2147483647, %v528
  %vm539 = vcmp.eq.f32.partialorder %v538, 8.507059e+37
  %v540 = vand.u32 %v528, 2147483648
  %v541 = vor.u32 1.1754944e-38, %v540
  %v542 = vsel %vm539, %v541, %v537
  %v543 = vmul.f32 1.0, %v542
  %v544 = vadd.f32 %v521, %v32
  %v545 = vadd.f32 %v461, %v240
  %547 = vrot.lane.b32.xlu0 %v545, 64
  %v548 = vpop.permute.xlu0 %547
  %v550 = vmul.f32 %v543, %v548
  %552 = vrot.lane.b32.xlu0 %v550, 64
  %v553 = vpop.permute.xlu0 %552
  %v555 = vadd.f32 %v544, %v553
  %v556 = vtanh.pop %v555
  %v557 = vsub.f32 1.0, %v543
  %559 = vrot.lane.b32.xlu0 %v556, 96
  %v560 = vpop.permute.xlu0 %559
  %v562 = vmul.f32 %v557, %v560
  %v563 = vmul.f32 %v543, %v415
  %v564 = vadd.f32 %v562, %v563
  %566 = vrot.lane.b32.xlu0 %v564, 96
  %v567 = vpop.permute.xlu0 %566
  %569 = vst.msk [vmem:[#allocation3 + $0x2] sm:$0x1] %vm270, %v567
  %v570 = vsel %vm64, %v567, 0
  %572 = vmatpush.msra.mxu0 0.0
  %573 = vmatpush.msra.mxu0 0.0
  %574 = vmatpush.msra.mxu0 0.0
  %575 = vmatpush.msra.mxu0 0.0
  %576 = vmatpush.msra.mxu0 0.0
  %577 = vmatpush.msra.mxu0 0.0
  %578 = vmatpush.msra.mxu0 0.0
  %579 = vmatpush.msra.mxu0 0.0
  %580 = vmatpush.msra.mxu0 0.0
  %581 = vmatpush.msra.mxu0 0.0
  %582 = vmatpush.msra.mxu0 0.0
  %583 = vmatpush.msra.mxu0 0.0
  %584 = vmatpush.msra.mxu0 %v26
  %585 = vmatpush.msra.mxu0 %v24
  %586 = vmatpush.msra.mxu0 %v22
  %587 = vmatpush.msra.mxu0 %v20
  %588 = vmatmul.f32.gmra.mxu0 %v570
  %v589 = vpop.f32.mrf.mxu0
  %v590 = vadd.f32 0.0, %v589
  %591 = vdwg.mxu0
  %592 = vmatpush.msra.mxu0 0.0
  %593 = vmatpush.msra.mxu0 0.0
  %594 = vmatpush.msra.mxu0 0.0
  %595 = vmatpush.msra.mxu0 0.0
  %596 = vmatpush.msra.mxu0 0.0
  %597 = vmatpush.msra.mxu0 0.0
  %598 = vmatpush.msra.mxu0 0.0
  %599 = vmatpush.msra.mxu0 0.0
  %600 = vmatpush.msra.mxu0 0.0
  %601 = vmatpush.msra.mxu0 0.0
  %602 = vmatpush.msra.mxu0 0.0
  %603 = vmatpush.msra.mxu0 0.0
  %604 = vmatpush.msra.mxu0 %v27
  %605 = vmatpush.msra.mxu0 %v25
  %606 = vmatpush.msra.mxu0 %v23
  %607 = vmatpush.msra.mxu0 %v21
  %608 = vmatmul.f32.gmra.mxu0 %v570
  %v609 = vpop.f32.mrf.mxu0
  %v610 = vadd.f32 0.0, %v609
  %611 = vdwg.mxu0
  %v612 = vld [vmem:[#allocation2 + $0x3] ss:$0 sm:$0xff]
  %v613 = vadd.f32 %v612, %v590
  %v614 = vsel %vm156, %v613, -inf
  %615 = vmax.xlane.f32.xlu0 %v614
  %v616 = vpop.xlane.xlu0 %615
  %v617 = vsub.f32 %v613, %v616
  %v618 = vmul.f32 %v617, 1.442695
  %v619 = vpow.pop %v618
  %v620 = vsel %vm156, %v619, 0.0
  %621 = vadd.xlane.f32.xlu0 %v620
  %v622 = vpop.xlane.xlu0 %621
  %v623 = vrcp.pop %v622
  %v624 = vmul.f32 %v619, %v623
  %625 = vst [vmem:[%s5 + $0xb] sm:$0x1] %v624
  %v626 = vld [vmem:[#allocation2 + $0xb] ss:$0 sm:$0xff]
  %627 = vmatpush.msra.mxu0 %v48
  %628 = vmatpush.msra.mxu0 %v47
  %629 = vmatpush.msra.mxu0 %v46
  %630 = vmatpush.msra.mxu0 %v45
  %631 = vmatpush.msra.mxu0 %v44
  %632 = vmatpush.msra.mxu0 %v43
  %633 = vmatpush.msra.mxu0 %v42
  %634 = vmatpush.msra.mxu0 %v41
  %635 = vmatpush.msra.mxu0 %v40
  %636 = vmatpush.msra.mxu0 %v39
  %637 = vmatpush.msra.mxu0 %v38
  %638 = vmatpush.msra.mxu0 %v37
  %639 = vmatpush.msra.mxu0 %v36
  %640 = vmatpush.msra.mxu0 %v35
  %641 = vmatpush.msra.mxu0 %v34
  %642 = vmatpush.msra.mxu0 %v33
  %643 = vmatmul.f32.gmra.mxu0 %v624
  %v644 = vpop.f32.mrf.mxu0
  %v645 = vadd.f32 0.0, %v644
  %646 = vdwg.mxu0
  %v647 = vadd.f32 %v626, %v645
  %v648 = vmax.f32 %v647, 0.0
  %v650 = vsel %vm64, %v648, 0
  %652 = vmatpush.msra.mxu0 0.0
  %653 = vmatpush.msra.mxu0 0.0
  %654 = vmatpush.msra.mxu0 0.0
  %655 = vmatpush.msra.mxu0 0.0
  %656 = vmatpush.msra.mxu0 0.0
  %657 = vmatpush.msra.mxu0 0.0
  %658 = vmatpush.msra.mxu0 0.0
  %659 = vmatpush.msra.mxu0 0.0
  %660 = vmatpush.msra.mxu0 0.0
  %661 = vmatpush.msra.mxu0 0.0
  %662 = vmatpush.msra.mxu0 0.0
  %663 = vmatpush.msra.mxu0 0.0
  %664 = vmatpush.msra.mxu0 %v31
  %665 = vmatpush.msra.mxu0 %v30
  %666 = vmatpush.msra.mxu0 %v29
  %667 = vmatpush.msra.mxu0 %v28
  %668 = vmatmul.f32.gmra.mxu0 %v650
  %v669 = vpop.f32.mrf.mxu0
  %v670 = vadd.f32 0.0, %v669
  %671 = vdwg.mxu0
  %v672 = vadd.f32 %v670, %v610
  %v673 = vadd.f32 %v672, %v32
  %v674 = vxor.u32 %v673, 2147483648
  %v675 = vmul.f32 %v674, 1.442695
  %v676 = vpow.pop %v675
  %v677 = vadd.f32 %v676, 1.0
  %v678 = vrcp.pop %v677
  %v679 = vmul.f32 %v677, %v678
  %v680 = vsub.f32 1.0, %v679
  %v681 = vmul.f32 %v678, %v680
  %v682 = vadd.f32 %v678, %v681
  %vm683 = vweird.f32 %v677
  %vm684 = vweird.f32 %v678
  %vm685 = vmor %vm683, %vm684
  %v686 = vsel %vm685, %v678, %v682
  %v687 = vand.u32 2147483647, %v677
  %vm688 = vcmp.eq.f32.partialorder %v687, 8.507059e+37
  %v689 = vand.u32 %v677, 2147483648
  %v690 = vor.u32 1.1754944e-38, %v689
  %v691 = vsel %vm688, %v690, %v686
  %v692 = vmul.f32 1.0, %v691
  %v693 = vadd.f32 %v670, %v32
  %v694 = vadd.f32 %v610, %v240
  %696 = vrot.lane.b32.xlu0 %v694, 64
  %v697 = vpop.permute.xlu0 %696
  %v699 = vmul.f32 %v692, %v697
  %701 = vrot.lane.b32.xlu0 %v699, 64
  %v702 = vpop.permute.xlu0 %701
  %v704 = vadd.f32 %v693, %v702
  %v705 = vtanh.pop %v704
  %v706 = vsub.f32 1.0, %v692
  %708 = vrot.lane.b32.xlu0 %v705, 96
  %v709 = vpop.permute.xlu0 %708
  %v711 = vmul.f32 %v706, %v709
  %v712 = vmul.f32 %v692, %v564
  %v713 = vadd.f32 %v711, %v712
  %715 = vrot.lane.b32.xlu0 %v713, 96
  %v716 = vpop.permute.xlu0 %715
  %718 = vst.msk [vmem:[#allocation3 + $0x3] sm:$0x1] %vm270, %v716
  %v719 = vsel %vm64, %v716, 0
  %721 = vmatpush.msra.mxu0 0.0
  %722 = vmatpush.msra.mxu0 0.0
  %723 = vmatpush.msra.mxu0 0.0
  %724 = vmatpush.msra.mxu0 0.0
  %725 = vmatpush.msra.mxu0 0.0
  %726 = vmatpush.msra.mxu0 0.0
  %727 = vmatpush.msra.mxu0 0.0
  %728 = vmatpush.msra.mxu0 0.0
  %729 = vmatpush.msra.mxu0 0.0
  %730 = vmatpush.msra.mxu0 0.0
  %731 = vmatpush.msra.mxu0 0.0
  %732 = vmatpush.msra.mxu0 0.0
  %733 = vmatpush.msra.mxu0 %v26
  %734 = vmatpush.msra.mxu0 %v24
  %735 = vmatpush.msra.mxu0 %v22
  %736 = vmatpush.msra.mxu0 %v20
  %737 = vmatmul.f32.gmra.mxu0 %v719
  %v738 = vpop.f32.mrf.mxu0
  %v739 = vadd.f32 0.0, %v738
  %740 = vdwg.mxu0
  %741 = vmatpush.msra.mxu0 0.0
  %742 = vmatpush.msra.mxu0 0.0
  %743 = vmatpush.msra.mxu0 0.0
  %744 = vmatpush.msra.mxu0 0.0
  %745 = vmatpush.msra.mxu0 0.0
  %746 = vmatpush.msra.mxu0 0.0
  %747 = vmatpush.msra.mxu0 0.0
  %748 = vmatpush.msra.mxu0 0.0
  %749 = vmatpush.msra.mxu0 0.0
  %750 = vmatpush.msra.mxu0 0.0
  %751 = vmatpush.msra.mxu0 0.0
  %752 = vmatpush.msra.mxu0 0.0
  %753 = vmatpush.msra.mxu0 %v27
  %754 = vmatpush.msra.mxu0 %v25
  %755 = vmatpush.msra.mxu0 %v23
  %756 = vmatpush.msra.mxu0 %v21
  %757 = vmatmul.f32.gmra.mxu0 %v719
  %v758 = vpop.f32.mrf.mxu0
  %v759 = vadd.f32 0.0, %v758
  %760 = vdwg.mxu0
  %v761 = vld [vmem:[#allocation2 + $0x4] ss:$0 sm:$0xff]
  %v762 = vadd.f32 %v761, %v739
  %v763 = vsel %vm156, %v762, -inf
  %764 = vmax.xlane.f32.xlu0 %v763
  %v765 = vpop.xlane.xlu0 %764
  %v766 = vsub.f32 %v762, %v765
  %v767 = vmul.f32 %v766, 1.442695
  %v768 = vpow.pop %v767
  %v769 = vsel %vm156, %v768, 0.0
  %770 = vadd.xlane.f32.xlu0 %v769
  %v771 = vpop.xlane.xlu0 %770
  %v772 = vrcp.pop %v771
  %v773 = vmul.f32 %v768, %v772
  %774 = vst [vmem:[%s5 + $0xc] sm:$0x1] %v773
  %v775 = vld [vmem:[#allocation2 + $0xc] ss:$0 sm:$0xff]
  %776 = vmatpush.msra.mxu0 %v48
  %777 = vmatpush.msra.mxu0 %v47
  %778 = vmatpush.msra.mxu0 %v46
  %779 = vmatpush.msra.mxu0 %v45
  %780 = vmatpush.msra.mxu0 %v44
  %781 = vmatpush.msra.mxu0 %v43
  %782 = vmatpush.msra.mxu0 %v42
  %783 = vmatpush.msra.mxu0 %v41
  %784 = vmatpush.msra.mxu0 %v40
  %785 = vmatpush.msra.mxu0 %v39
  %786 = vmatpush.msra.mxu0 %v38
  %787 = vmatpush.msra.mxu0 %v37
  %788 = vmatpush.msra.mxu0 %v36
  %789 = vmatpush.msra.mxu0 %v35
  %790 = vmatpush.msra.mxu0 %v34
  %791 = vmatpush.msra.mxu0 %v33
  %792 = vmatmul.f32.gmra.mxu0 %v773
  %v793 = vpop.f32.mrf.mxu0
  %v794 = vadd.f32 0.0, %v793
  %795 = vdwg.mxu0
  %v796 = vadd.f32 %v775, %v794
  %v797 = vmax.f32 %v796, 0.0
  %v799 = vsel %vm64, %v797, 0
  %801 = vmatpush.msra.mxu0 0.0
  %802 = vmatpush.msra.mxu0 0.0
  %803 = vmatpush.msra.mxu0 0.0
  %804 = vmatpush.msra.mxu0 0.0
  %805 = vmatpush.msra.mxu0 0.0
  %806 = vmatpush.msra.mxu0 0.0
  %807 = vmatpush.msra.mxu0 0.0
  %808 = vmatpush.msra.mxu0 0.0
  %809 = vmatpush.msra.mxu0 0.0
  %810 = vmatpush.msra.mxu0 0.0
  %811 = vmatpush.msra.mxu0 0.0
  %812 = vmatpush.msra.mxu0 0.0
  %813 = vmatpush.msra.mxu0 %v31
  %814 = vmatpush.msra.mxu0 %v30
  %815 = vmatpush.msra.mxu0 %v29
  %816 = vmatpush.msra.mxu0 %v28
  %817 = vmatmul.f32.gmra.mxu0 %v799
  %v818 = vpop.f32.mrf.mxu0
  %v819 = vadd.f32 0.0, %v818
  %820 = vdwg.mxu0
  %v821 = vadd.f32 %v819, %v759
  %v822 = vadd.f32 %v821, %v32
  %v823 = vxor.u32 %v822, 2147483648
  %v824 = vmul.f32 %v823, 1.442695
  %v825 = vpow.pop %v824
  %v826 = vadd.f32 %v825, 1.0
  %v827 = vrcp.pop %v826
  %v828 = vmul.f32 %v826, %v827
  %v829 = vsub.f32 1.0, %v828
  %v830 = vmul.f32 %v827, %v829
  %v831 = vadd.f32 %v827, %v830
  %vm832 = vweird.f32 %v826
  %vm833 = vweird.f32 %v827
  %vm834 = vmor %vm832, %vm833
  %v835 = vsel %vm834, %v827, %v831
  %v836 = vand.u32 2147483647, %v826
  %vm837 = vcmp.eq.f32.partialorder %v836, 8.507059e+37
  %v838 = vand.u32 %v826, 2147483648
  %v839 = vor.u32 1.1754944e-38, %v838
  %v840 = vsel %vm837, %v839, %v835
  %v841 = vmul.f32 1.0, %v840
  %v842 = vadd.f32 %v819, %v32
  %v843 = vadd.f32 %v759, %v240
  %845 = vrot.lane.b32.xlu0 %v843, 64
  %v846 = vpop.permute.xlu0 %845
  %v848 = vmul.f32 %v841, %v846
  %850 = vrot.lane.b32.xlu0 %v848, 64
  %v851 = vpop.permute.xlu0 %850
  %v853 = vadd.f32 %v842, %v851
  %v854 = vtanh.pop %v853
  %v855 = vsub.f32 1.0, %v841
  %857 = vrot.lane.b32.xlu0 %v854, 96
  %v858 = vpop.permute.xlu0 %857
  %v860 = vmul.f32 %v855, %v858
  %v861 = vmul.f32 %v841, %v713
  %v862 = vadd.f32 %v860, %v861
  %864 = vrot.lane.b32.xlu0 %v862, 96
  %v865 = vpop.permute.xlu0 %864
  %867 = vst.msk [vmem:[#allocation3 + $0x4] sm:$0x1] %vm270, %v865
  %v868 = vsel %vm64, %v865, 0
  %870 = vmatpush.msra.mxu0 0.0
  %871 = vmatpush.msra.mxu0 0.0
  %872 = vmatpush.msra.mxu0 0.0
  %873 = vmatpush.msra.mxu0 0.0
  %874 = vmatpush.msra.mxu0 0.0
  %875 = vmatpush.msra.mxu0 0.0
  %876 = vmatpush.msra.mxu0 0.0
  %877 = vmatpush.msra.mxu0 0.0
  %878 = vmatpush.msra.mxu0 0.0
  %879 = vmatpush.msra.mxu0 0.0
  %880 = vmatpush.msra.mxu0 0.0
  %881 = vmatpush.msra.mxu0 0.0
  %882 = vmatpush.msra.mxu0 %v26
  %883 = vmatpush.msra.mxu0 %v24
  %884 = vmatpush.msra.mxu0 %v22
  %885 = vmatpush.msra.mxu0 %v20
  %886 = vmatmul.f32.gmra.mxu0 %v868
  %v887 = vpop.f32.mrf.mxu0
  %v888 = vadd.f32 0.0, %v887
  %889 = vdwg.mxu0
  %890 = vmatpush.msra.mxu0 0.0
  %891 = vmatpush.msra.mxu0 0.0
  %892 = vmatpush.msra.mxu0 0.0
  %893 = vmatpush.msra.mxu0 0.0
  %894 = vmatpush.msra.mxu0 0.0
  %895 = vmatpush.msra.mxu0 0.0
  %896 = vmatpush.msra.mxu0 0.0
  %897 = vmatpush.msra.mxu0 0.0
  %898 = vmatpush.msra.mxu0 0.0
  %899 = vmatpush.msra.mxu0 0.0
  %900 = vmatpush.msra.mxu0 0.0
  %901 = vmatpush.msra.mxu0 0.0
  %902 = vmatpush.msra.mxu0 %v27
  %903 = vmatpush.msra.mxu0 %v25
  %904 = vmatpush.msra.mxu0 %v23
  %905 = vmatpush.msra.mxu0 %v21
  %906 = vmatmul.f32.gmra.mxu0 %v868
  %v907 = vpop.f32.mrf.mxu0
  %v908 = vadd.f32 0.0, %v907
  %909 = vdwg.mxu0
  %v910 = vld [vmem:[#allocation2 + $0x5] ss:$0 sm:$0xff]
  %v911 = vadd.f32 %v910, %v888
  %v912 = vsel %vm156, %v911, -inf
  %913 = vmax.xlane.f32.xlu0 %v912
  %v914 = vpop.xlane.xlu0 %913
  %v915 = vsub.f32 %v911, %v914
  %v916 = vmul.f32 %v915, 1.442695
  %v917 = vpow.pop %v916
  %v918 = vsel %vm156, %v917, 0.0
  %919 = vadd.xlane.f32.xlu0 %v918
  %v920 = vpop.xlane.xlu0 %919
  %v921 = vrcp.pop %v920
  %v922 = vmul.f32 %v917, %v921
  %923 = vst [vmem:[%s5 + $0xd] sm:$0x1] %v922
  %v924 = vld [vmem:[#allocation2 + $0xd] ss:$0 sm:$0xff]
  %925 = vmatpush.msra.mxu0 %v48
  %926 = vmatpush.msra.mxu0 %v47
  %927 = vmatpush.msra.mxu0 %v46
  %928 = vmatpush.msra.mxu0 %v45
  %929 = vmatpush.msra.mxu0 %v44
  %930 = vmatpush.msra.mxu0 %v43
  %931 = vmatpush.msra.mxu0 %v42
  %932 = vmatpush.msra.mxu0 %v41
  %933 = vmatpush.msra.mxu0 %v40
  %934 = vmatpush.msra.mxu0 %v39
  %935 = vmatpush.msra.mxu0 %v38
  %936 = vmatpush.msra.mxu0 %v37
  %937 = vmatpush.msra.mxu0 %v36
  %938 = vmatpush.msra.mxu0 %v35
  %939 = vmatpush.msra.mxu0 %v34
  %940 = vmatpush.msra.mxu0 %v33
  %941 = vmatmul.f32.gmra.mxu0 %v922
  %v942 = vpop.f32.mrf.mxu0
  %v943 = vadd.f32 0.0, %v942
  %944 = vdwg.mxu0
  %v945 = vadd.f32 %v924, %v943
  %v946 = vmax.f32 %v945, 0.0
  %v948 = vsel %vm64, %v946, 0
  %950 = vmatpush.msra.mxu0 0.0
  %951 = vmatpush.msra.mxu0 0.0
  %952 = vmatpush.msra.mxu0 0.0
  %953 = vmatpush.msra.mxu0 0.0
  %954 = vmatpush.msra.mxu0 0.0
  %955 = vmatpush.msra.mxu0 0.0
  %956 = vmatpush.msra.mxu0 0.0
  %957 = vmatpush.msra.mxu0 0.0
  %958 = vmatpush.msra.mxu0 0.0
  %959 = vmatpush.msra.mxu0 0.0
  %960 = vmatpush.msra.mxu0 0.0
  %961 = vmatpush.msra.mxu0 0.0
  %962 = vmatpush.msra.mxu0 %v31
  %963 = vmatpush.msra.mxu0 %v30
  %964 = vmatpush.msra.mxu0 %v29
  %965 = vmatpush.msra.mxu0 %v28
  %966 = vmatmul.f32.gmra.mxu0 %v948
  %v967 = vpop.f32.mrf.mxu0
  %v968 = vadd.f32 0.0, %v967
  %969 = vdwg.mxu0
  %v970 = vadd.f32 %v968, %v908
  %v971 = vadd.f32 %v970, %v32
  %v972 = vxor.u32 %v971, 2147483648
  %v973 = vmul.f32 %v972, 1.442695
  %v974 = vpow.pop %v973
  %v975 = vadd.f32 %v974, 1.0
  %v976 = vrcp.pop %v975
  %v977 = vmul.f32 %v975, %v976
  %v978 = vsub.f32 1.0, %v977
  %v979 = vmul.f32 %v976, %v978
  %v980 = vadd.f32 %v976, %v979
  %vm981 = vweird.f32 %v975
  %vm982 = vweird.f32 %v976
  %vm983 = vmor %vm981, %vm982
  %v984 = vsel %vm983, %v976, %v980
  %v985 = vand.u32 2147483647, %v975
  %vm986 = vcmp.eq.f32.partialorder %v985, 8.507059e+37
  %v987 = vand.u32 %v975, 2147483648
  %v988 = vor.u32 1.1754944e-38, %v987
  %v989 = vsel %vm986, %v988, %v984
  %v990 = vmul.f32 1.0, %v989
  %v991 = vadd.f32 %v968, %v32
  %v992 = vadd.f32 %v908, %v240
  %994 = vrot.lane.b32.xlu0 %v992, 64
  %v995 = vpop.permute.xlu0 %994
  %v997 = vmul.f32 %v990, %v995
  %999 = vrot.lane.b32.xlu0 %v997, 64
  %v1000 = vpop.permute.xlu0 %999
  %v1002 = vadd.f32 %v991, %v1000
  %v1003 = vtanh.pop %v1002
  %v1004 = vsub.f32 1.0, %v990
  %1006 = vrot.lane.b32.xlu0 %v1003, 96
  %v1007 = vpop.permute.xlu0 %1006
  %v1009 = vmul.f32 %v1004, %v1007
  %v1010 = vmul.f32 %v990, %v862
  %v1011 = vadd.f32 %v1009, %v1010
  %1013 = vrot.lane.b32.xlu0 %v1011, 96
  %v1014 = vpop.permute.xlu0 %1013
  %1016 = vst.msk [vmem:[#allocation3 + $0x5] sm:$0x1] %vm270, %v1014
  %v1017 = vsel %vm64, %v1014, 0
  %1019 = vmatpush.msra.mxu0 0.0
  %1020 = vmatpush.msra.mxu0 0.0
  %1021 = vmatpush.msra.mxu0 0.0
  %1022 = vmatpush.msra.mxu0 0.0
  %1023 = vmatpush.msra.mxu0 0.0
  %1024 = vmatpush.msra.mxu0 0.0
  %1025 = vmatpush.msra.mxu0 0.0
  %1026 = vmatpush.msra.mxu0 0.0
  %1027 = vmatpush.msra.mxu0 0.0
  %1028 = vmatpush.msra.mxu0 0.0
  %1029 = vmatpush.msra.mxu0 0.0
  %1030 = vmatpush.msra.mxu0 0.0
  %1031 = vmatpush.msra.mxu0 %v26
  %1032 = vmatpush.msra.mxu0 %v24
  %1033 = vmatpush.msra.mxu0 %v22
  %1034 = vmatpush.msra.mxu0 %v20
  %1035 = vmatmul.f32.gmra.mxu0 %v1017
  %v1036 = vpop.f32.mrf.mxu0
  %v1037 = vadd.f32 0.0, %v1036
  %1038 = vdwg.mxu0
  %1039 = vmatpush.msra.mxu0 0.0
  %1040 = vmatpush.msra.mxu0 0.0
  %1041 = vmatpush.msra.mxu0 0.0
  %1042 = vmatpush.msra.mxu0 0.0
  %1043 = vmatpush.msra.mxu0 0.0
  %1044 = vmatpush.msra.mxu0 0.0
  %1045 = vmatpush.msra.mxu0 0.0
  %1046 = vmatpush.msra.mxu0 0.0
  %1047 = vmatpush.msra.mxu0 0.0
  %1048 = vmatpush.msra.mxu0 0.0
  %1049 = vmatpush.msra.mxu0 0.0
  %1050 = vmatpush.msra.mxu0 0.0
  %1051 = vmatpush.msra.mxu0 %v27
  %1052 = vmatpush.msra.mxu0 %v25
  %1053 = vmatpush.msra.mxu0 %v23
  %1054 = vmatpush.msra.mxu0 %v21
  %1055 = vmatmul.f32.gmra.mxu0 %v1017
  %v1056 = vpop.f32.mrf.mxu0
  %v1057 = vadd.f32 0.0, %v1056
  %1058 = vdwg.mxu0
  %v1059 = vld [vmem:[#allocation2 + $0x6] ss:$0 sm:$0xff]
  %v1060 = vadd.f32 %v1059, %v1037
  %v1061 = vsel %vm156, %v1060, -inf
  %1062 = vmax.xlane.f32.xlu0 %v1061
  %v1063 = vpop.xlane.xlu0 %1062
  %v1064 = vsub.f32 %v1060, %v1063
  %v1065 = vmul.f32 %v1064, 1.442695
  %v1066 = vpow.pop %v1065
  %v1067 = vsel %vm156, %v1066, 0.0
  %1068 = vadd.xlane.f32.xlu0 %v1067
  %v1069 = vpop.xlane.xlu0 %1068
  %v1070 = vrcp.pop %v1069
  %v1071 = vmul.f32 %v1066, %v1070
  %1072 = vst [vmem:[%s5 + $0xe] sm:$0x1] %v1071
  %v1073 = vld [vmem:[#allocation2 + $0xe] ss:$0 sm:$0xff]
  %1074 = vmatpush.msra.mxu0 %v48
  %1075 = vmatpush.msra.mxu0 %v47
  %1076 = vmatpush.msra.mxu0 %v46
  %1077 = vmatpush.msra.mxu0 %v45
  %1078 = vmatpush.msra.mxu0 %v44
  %1079 = vmatpush.msra.mxu0 %v43
  %1080 = vmatpush.msra.mxu0 %v42
  %1081 = vmatpush.msra.mxu0 %v41
  %1082 = vmatpush.msra.mxu0 %v40
  %1083 = vmatpush.msra.mxu0 %v39
  %1084 = vmatpush.msra.mxu0 %v38
  %1085 = vmatpush.msra.mxu0 %v37
  %1086 = vmatpush.msra.mxu0 %v36
  %1087 = vmatpush.msra.mxu0 %v35
  %1088 = vmatpush.msra.mxu0 %v34
  %1089 = vmatpush.msra.mxu0 %v33
  %1090 = vmatmul.f32.gmra.mxu0 %v1071
  %v1091 = vpop.f32.mrf.mxu0
  %v1092 = vadd.f32 0.0, %v1091
  %1093 = vdwg.mxu0
  %v1094 = vadd.f32 %v1073, %v1092
  %v1095 = vmax.f32 %v1094, 0.0
  %v1097 = vsel %vm64, %v1095, 0
  %1099 = vmatpush.msra.mxu0 0.0
  %1100 = vmatpush.msra.mxu0 0.0
  %1101 = vmatpush.msra.mxu0 0.0
  %1102 = vmatpush.msra.mxu0 0.0
  %1103 = vmatpush.msra.mxu0 0.0
  %1104 = vmatpush.msra.mxu0 0.0
  %1105 = vmatpush.msra.mxu0 0.0
  %1106 = vmatpush.msra.mxu0 0.0
  %1107 = vmatpush.msra.mxu0 0.0
  %1108 = vmatpush.msra.mxu0 0.0
  %1109 = vmatpush.msra.mxu0 0.0
  %1110 = vmatpush.msra.mxu0 0.0
  %1111 = vmatpush.msra.mxu0 %v31
  %1112 = vmatpush.msra.mxu0 %v30
  %1113 = vmatpush.msra.mxu0 %v29
  %1114 = vmatpush.msra.mxu0 %v28
  %1115 = vmatmul.f32.gmra.mxu0 %v1097
  %v1116 = vpop.f32.mrf.mxu0
  %v1117 = vadd.f32 0.0, %v1116
  %1118 = vdwg.mxu0
  %v1119 = vadd.f32 %v1117, %v1057
  %v1120 = vadd.f32 %v1119, %v32
  %v1121 = vxor.u32 %v1120, 2147483648
  %v1122 = vmul.f32 %v1121, 1.442695
  %v1123 = vpow.pop %v1122
  %v1124 = vadd.f32 %v1123, 1.0
  %v1125 = vrcp.pop %v1124
  %v1126 = vmul.f32 %v1124, %v1125
  %v1127 = vsub.f32 1.0, %v1126
  %v1128 = vmul.f32 %v1125, %v1127
  %v1129 = vadd.f32 %v1125, %v1128
  %vm1130 = vweird.f32 %v1124
  %vm1131 = vweird.f32 %v1125
  %vm1132 = vmor %vm1130, %vm1131
  %v1133 = vsel %vm1132, %v1125, %v1129
  %v1134 = vand.u32 2147483647, %v1124
  %vm1135 = vcmp.eq.f32.partialorder %v1134, 8.507059e+37
  %v1136 = vand.u32 %v1124, 2147483648
  %v1137 = vor.u32 1.1754944e-38, %v1136
  %v1138 = vsel %vm1135, %v1137, %v1133
  %v1139 = vmul.f32 1.0, %v1138
  %v1140 = vadd.f32 %v1117, %v32
  %v1141 = vadd.f32 %v1057, %v240
  %1143 = vrot.lane.b32.xlu0 %v1141, 64
  %v1144 = vpop.permute.xlu0 %1143
  %v1146 = vmul.f32 %v1139, %v1144
  %1148 = vrot.lane.b32.xlu0 %v1146, 64
  %v1149 = vpop.permute.xlu0 %1148
  %v1151 = vadd.f32 %v1140, %v1149
  %v1152 = vtanh.pop %v1151
  %v1153 = vsub.f32 1.0, %v1139
  %1155 = vrot.lane.b32.xlu0 %v1152, 96
  %v1156 = vpop.permute.xlu0 %1155
  %v1158 = vmul.f32 %v1153, %v1156
  %v1159 = vmul.f32 %v1139, %v1011
  %v1160 = vadd.f32 %v1158, %v1159
  %1162 = vrot.lane.b32.xlu0 %v1160, 96
  %v1163 = vpop.permute.xlu0 %1162
  %1165 = vst.msk [vmem:[#allocation3 + $0x6] sm:$0x1] %vm270, %v1163
  %v1166 = vsel %vm64, %v1163, 0
  %1168 = vmatpush.msra.mxu0 0.0
  %1169 = vmatpush.msra.mxu0 0.0
  %1170 = vmatpush.msra.mxu0 0.0
  %1171 = vmatpush.msra.mxu0 0.0
  %1172 = vmatpush.msra.mxu0 0.0
  %1173 = vmatpush.msra.mxu0 0.0
  %1174 = vmatpush.msra.mxu0 0.0
  %1175 = vmatpush.msra.mxu0 0.0
  %1176 = vmatpush.msra.mxu0 0.0
  %1177 = vmatpush.msra.mxu0 0.0
  %1178 = vmatpush.msra.mxu0 0.0
  %1179 = vmatpush.msra.mxu0 0.0
  %1180 = vmatpush.msra.mxu0 %v26
  %1181 = vmatpush.msra.mxu0 %v24
  %1182 = vmatpush.msra.mxu0 %v22
  %1183 = vmatpush.msra.mxu0 %v20
  %1184 = vmatmul.f32.gmra.mxu0 %v1166
  %v1185 = vpop.f32.mrf.mxu0
  %v1186 = vadd.f32 0.0, %v1185
  %1187 = vdwg.mxu0
  %1188 = vmatpush.msra.mxu0 0.0
  %1189 = vmatpush.msra.mxu0 0.0
  %1190 = vmatpush.msra.mxu0 0.0
  %1191 = vmatpush.msra.mxu0 0.0
  %1192 = vmatpush.msra.mxu0 0.0
  %1193 = vmatpush.msra.mxu0 0.0
  %1194 = vmatpush.msra.mxu0 0.0
  %1195 = vmatpush.msra.mxu0 0.0
  %1196 = vmatpush.msra.mxu0 0.0
  %1197 = vmatpush.msra.mxu0 0.0
  %1198 = vmatpush.msra.mxu0 0.0
  %1199 = vmatpush.msra.mxu0 0.0
  %1200 = vmatpush.msra.mxu0 %v27
  %1201 = vmatpush.msra.mxu0 %v25
  %1202 = vmatpush.msra.mxu0 %v23
  %1203 = vmatpush.msra.mxu0 %v21
  %1204 = vmatmul.f32.gmra.mxu0 %v1166
  %v1205 = vpop.f32.mrf.mxu0
  %v1206 = vadd.f32 0.0, %v1205
  %1207 = vdwg.mxu0
  %v1208 = vld [vmem:[#allocation2 + $0x7] ss:$0 sm:$0xff]
  %v1209 = vadd.f32 %v1208, %v1186
  %v1210 = vsel %vm156, %v1209, -inf
  %1211 = vmax.xlane.f32.xlu0 %v1210
  %v1212 = vpop.xlane.xlu0 %1211
  %v1213 = vsub.f32 %v1209, %v1212
  %v1214 = vmul.f32 %v1213, 1.442695
  %v1215 = vpow.pop %v1214
  %v1216 = vsel %vm156, %v1215, 0.0
  %1217 = vadd.xlane.f32.xlu0 %v1216
  %v1218 = vpop.xlane.xlu0 %1217
  %v1219 = vrcp.pop %v1218
  %v1220 = vmul.f32 %v1215, %v1219
  %1221 = vst [vmem:[%s5 + $0xf] sm:$0x1] %v1220
  %v1222 = vld [vmem:[#allocation2 + $0xf] ss:$0 sm:$0xff]
  %1223 = vmatpush.msra.mxu0 %v48
  %1224 = vmatpush.msra.mxu0 %v47
  %1225 = vmatpush.msra.mxu0 %v46
  %1226 = vmatpush.msra.mxu0 %v45
  %1227 = vmatpush.msra.mxu0 %v44
  %1228 = vmatpush.msra.mxu0 %v43
  %1229 = vmatpush.msra.mxu0 %v42
  %1230 = vmatpush.msra.mxu0 %v41
  %1231 = vmatpush.msra.mxu0 %v40
  %1232 = vmatpush.msra.mxu0 %v39
  %1233 = vmatpush.msra.mxu0 %v38
  %1234 = vmatpush.msra.mxu0 %v37
  %1235 = vmatpush.msra.mxu0 %v36
  %1236 = vmatpush.msra.mxu0 %v35
  %1237 = vmatpush.msra.mxu0 %v34
  %1238 = vmatpush.msra.mxu0 %v33
  %1239 = vmatmul.f32.gmra.mxu0 %v1220
  %v1240 = vpop.f32.mrf.mxu0
  %v1241 = vadd.f32 0.0, %v1240
  %1242 = vdwg.mxu0
  %v1243 = vadd.f32 %v1222, %v1241
  %v1244 = vmax.f32 %v1243, 0.0
  %v1246 = vsel %vm64, %v1244, 0
  %1248 = vmatpush.msra.mxu0 0.0
  %1249 = vmatpush.msra.mxu0 0.0
  %1250 = vmatpush.msra.mxu0 0.0
  %1251 = vmatpush.msra.mxu0 0.0
  %1252 = vmatpush.msra.mxu0 0.0
  %1253 = vmatpush.msra.mxu0 0.0
  %1254 = vmatpush.msra.mxu0 0.0
  %1255 = vmatpush.msra.mxu0 0.0
  %1256 = vmatpush.msra.mxu0 0.0
  %1257 = vmatpush.msra.mxu0 0.0
  %1258 = vmatpush.msra.mxu0 0.0
  %1259 = vmatpush.msra.mxu0 0.0
  %1260 = vmatpush.msra.mxu0 %v31
  %1261 = vmatpush.msra.mxu0 %v30
  %1262 = vmatpush.msra.mxu0 %v29
  %1263 = vmatpush.msra.mxu0 %v28
  %1264 = vmatmul.f32.gmra.mxu0 %v1246
  %v1265 = vpop.f32.mrf.mxu0
  %v1266 = vadd.f32 0.0, %v1265
  %1267 = vdwg.mxu0
  %v1268 = vadd.f32 %v1266, %v1206
  %v1269 = vadd.f32 %v1268, %v32
  %v1270 = vxor.u32 %v1269, 2147483648
  %v1271 = vmul.f32 %v1270, 1.442695
  %v1272 = vpow.pop %v1271
  %v1273 = vadd.f32 %v1272, 1.0
  %v1274 = vrcp.pop %v1273
  %v1275 = vmul.f32 %v1273, %v1274
  %v1276 = vsub.f32 1.0, %v1275
  %v1277 = vmul.f32 %v1274, %v1276
  %v1278 = vadd.f32 %v1274, %v1277
  %vm1279 = vweird.f32 %v1273
  %vm1280 = vweird.f32 %v1274
  %vm1281 = vmor %vm1279, %vm1280
  %v1282 = vsel %vm1281, %v1274, %v1278
  %v1283 = vand.u32 2147483647, %v1273
  %vm1284 = vcmp.eq.f32.partialorder %v1283, 8.507059e+37
  %v1285 = vand.u32 %v1273, 2147483648
  %v1286 = vor.u32 1.1754944e-38, %v1285
  %v1287 = vsel %vm1284, %v1286, %v1282
  %v1288 = vmul.f32 1.0, %v1287
  %v1289 = vadd.f32 %v1266, %v32
  %v1290 = vadd.f32 %v1206, %v240
  %1292 = vrot.lane.b32.xlu0 %v1290, 64
  %v1293 = vpop.permute.xlu0 %1292
  %v1295 = vmul.f32 %v1288, %v1293
  %1297 = vrot.lane.b32.xlu0 %v1295, 64
  %v1298 = vpop.permute.xlu0 %1297
  %v1300 = vadd.f32 %v1289, %v1298
  %v1301 = vtanh.pop %v1300
  %v1302 = vsub.f32 1.0, %v1288
  %1304 = vrot.lane.b32.xlu0 %v1301, 96
  %v1305 = vpop.permute.xlu0 %1304
  %v1307 = vmul.f32 %v1302, %v1305
  %v1308 = vmul.f32 %v1288, %v1160
  %v1309 = vadd.f32 %v1307, %v1308
  %1311 = vrot.lane.b32.xlu0 %v1309, 96
  %v1312 = vpop.permute.xlu0 %1311
  %1314 = vst.msk [vmem:[#allocation3 + $0x7] sm:$0x1] %vm270, %v1312
  %v1315 = vld [vmem:[#allocation3] sm:$0xff]
  %v1316 = vld [vmem:[%s3 + $0x28] sm:$0xff]
  %v1317 = vld [vmem:[%s3 + $0x58] sm:$0xff]
  %v1318 = vld [vmem:[%s3 + $0x88] sm:$0xff]
  %v1319 = vld [vmem:[%s3 + $0xb8] sm:$0xff]
  %v1320 = vld [vmem:[%s4 + $0x3] sm:$0x1]
  %v1322 = vperm.slane %v1320, 0
  %v1325 = vsel %vm64, %v1315, 0
  %1327 = vmatpush.msra.mxu0 0.0
  %1328 = vmatpush.msra.mxu0 0.0
  %1329 = vmatpush.msra.mxu0 0.0
  %1330 = vmatpush.msra.mxu0 0.0
  %1331 = vmatpush.msra.mxu0 0.0
  %1332 = vmatpush.msra.mxu0 0.0
  %1333 = vmatpush.msra.mxu0 0.0
  %1334 = vmatpush.msra.mxu0 0.0
  %1335 = vmatpush.msra.mxu0 0.0
  %1336 = vmatpush.msra.mxu0 0.0
  %1337 = vmatpush.msra.mxu0 0.0
  %1338 = vmatpush.msra.mxu0 0.0
  %1339 = vmatpush.msra.mxu0 %v1319
  %1340 = vmatpush.msra.mxu0 %v1318
  %1341 = vmatpush.msra.mxu0 %v1317
  %1342 = vmatpush.msra.mxu0 %v1316
  %1343 = vmatmul.f32.gmra.mxu0 %v1325
  %v1344 = vpop.f32.mrf.mxu0
  %v1345 = vadd.f32 %v1322, %v1344
  %1346 = vdwg.mxu0
  %1347 = vmax.xlane.f32.xlu0 %v1345
  %v1348 = vpop.xlane.xlu0 %1347
  %v1349 = vsub.f32 %v1345, %v1348
  %v1350 = vmul.f32 %v1349, 1.442695
  %v1351 = vpow.pop %v1350
  %1352 = vadd.xlane.f32.xlu0 %v1351
  %v1353 = vpop.xlane.xlu0 %1352
  %v1354 = vlog2.pop %v1353
  %v1355 = vmul.f32 %v1354, 0.6931472
  %v1356 = vadd.f32 %v1348, %v1355
  %v1357 = vsub.f32 %v1345, %v1356
  %1358 = vst [vmem:[%s5] sm:$0xff] %v1357
  %v1359 = vsel %vm64, %v1315, 0.0
  %1360 = vst [vmem:[%s5 + $0x10] sm:$0xff] %v1359
  // Predicated region
  $region22: #{attn_decoder_decode.1} parent=0 // pred_check
    _
  $region23: #{attn_decoder_decode.1} parent=0 // pred_check_branch
    %1362 = sbr.rel (0) target = $region25
  $region24: #{attn_decoder_decode.1} parent=0 // pred_region
    _
  $region25: #{attn_decoder_decode.1} parent=0 // pred_fallthru
    _
  // Predicated region
  $region26: #{attn_decoder_decode.1} parent=0 // pred_check
    _
  $region27: #{attn_decoder_decode.1} parent=0 // pred_check_branch
    %1364 = sbr.rel (0) target = $region29
  $region28: #{attn_decoder_decode.1} parent=0 // pred_region
    _
  $region29: #{attn_decoder_decode.1} parent=0 // pred_fallthru
    _

</llo_original>
